<compile_context>
chip_gen: v5e
topology: v5e:2x2
jax: 0.10.0
libtpu: 0.0.40
codegen_flags: <defaults>
</compile_context>

<pallas_src>
import functools

import jax
import jax.numpy as jnp
from jax import lax
from jax.experimental import pallas as pl
from jax.experimental.pallas import tpu as pltpu


NUM_CLASSES = 10
NC_PAD = 128  # pad class dim to one full lane register


def _round_up(x, m):
    return ((x + m - 1) // m) * m


def _pgd_kernel(x0_ref, xinit_ref, w_ref, b_ref, oh_ref,
                logits_ref, xadv_ref, *, step_size, epsilon, num_steps):
    """PGD attack hot path (one batch tile).

    x0_ref    : [Bm, D]   clean inputs, flattened
    xinit_ref : [Bm, D]   starting point (clean or +uniform noise)
    w_ref     : [D, 128]  classifier weight (class-padded)
    b_ref     : [1, 128]  bias (-1e9 in padded class slots)
    oh_ref    : [Bm, 128] one-hot targets
    logits_ref: [Bm, 128] output logits of the final (adversarial) x
    xadv_ref  : [Bm, D]   output adversarial example
    """
    x0 = x0_ref[...]
    w = w_ref[...]
    oh = oh_ref[...]

    # Hoisted loop invariants: bias broadcast (not CSE'd by JAX) and the
    # combined eps-ball / valid-pixel bounds (exactly equivalent to the
    # per-step min/max + clip composition since eps >= 0 and x0 in [0,1]).
    b_full = jnp.broadcast_to(b_ref[...], oh.shape)
    lo = jnp.maximum(x0 - epsilon, 0.0)
    hi = jnp.minimum(x0 + epsilon, 1.0)

    def body(_, x):
        # forward: logits of the surrogate linear model
        logits = jnp.dot(x, w, preferred_element_type=jnp.float32) + b_full
        # stable softmax; reciprocal on the EUP slot
        m = jnp.max(logits, axis=-1, keepdims=True)
        e = jnp.exp(logits - m)
        inv = pl.reciprocal(jnp.sum(e, axis=-1, keepdims=True), approx=True)
        # d(sum-CE)/dlogits = softmax - onehot   (size_average=False -> no 1/B)
        g_logits = e * inv - oh
        # d loss / dx : contract W's class axis directly (no materialized W^T)
        g_x = lax.dot_general(g_logits, w,
                              dimension_numbers=(((1,), (1,)), ((), ())),
                              preferred_element_type=jnp.float32)
        # signed ascent step (torch.sign parity: sign(0) == 0)
        step = jnp.where(g_x > 0.0, step_size,
                         jnp.where(g_x < 0.0, -step_size, 0.0))
        # project into the intersection of the eps-ball and [0, 1]
        return jnp.minimum(jnp.maximum(x + step, lo), hi)

    x = lax.fori_loop(0, num_steps, body, xinit_ref[...], unroll=True)
    xadv_ref[...] = x
    # final model(x) on the adversarial example
    logits_ref[...] = jnp.dot(x, w, preferred_element_type=jnp.float32) + b_full


def attack_pgd(inputs_nchw, targets, W, b, *, epsilon, step_size, num_steps,
               rand, attack, key, block_m=256):
    """JAX wrapper mirroring AttackPGD.forward.

    Returns (logits [B, NUM_CLASSES], x [B, C, H, W]).
    """
    B, C, H, Wd = inputs_nchw.shape
    D = C * H * Wd
    x0 = inputs_nchw.reshape(B, D).astype(jnp.float32)

    if attack and rand:
        noise = jax.random.uniform(key, (B, D), dtype=jnp.float32,
                                   minval=-epsilon, maxval=epsilon)
        x_init = x0 + noise
    else:
        # distinct buffer (it is aliased/donated to the x_adv output below)
        x_init = x0 + 0.0

    steps = num_steps if attack else 0

    # Batch tile: 256 rows fills the v6e/v7x MXU M dim (128 is fine on v5e);
    # shrink for small batches (sublane multiple of 8) and pad B up to it.
    bm = min(int(block_m), _round_up(B, 8))
    Bp = _round_up(B, bm)
    if Bp != B:
        pad = ((0, Bp - B), (0, 0))
        x0 = jnp.pad(x0, pad)
        x_init = jnp.pad(x_init, pad)

    # Class-pad params: zero weight columns / -1e9 bias for padded classes so
    # the padded softmax matches the NUM_CLASSES softmax exactly.
    Wp = jnp.zeros((D, NC_PAD), jnp.float32).at[:, :NUM_CLASSES].set(W)
    bp = jnp.full((1, NC_PAD), -1e9, jnp.float32).at[0, :NUM_CLASSES].set(b)
    onehot = jax.nn.one_hot(targets, NC_PAD, dtype=jnp.float32)
    if Bp != B:
        onehot = jnp.pad(onehot, ((0, Bp - B), (0, 0)))

    kernel = functools.partial(_pgd_kernel, step_size=float(step_size),
                               epsilon=float(epsilon), num_steps=int(steps))

    # VMEM budget: resident W/b + double-buffered per-tile inputs + outputs,
    # with 2x headroom; clamped to stay inside every generation's VMEM.
    need = 4 * (D * NC_PAD + NC_PAD)                 # W + b
    need += 2 * 4 * bm * (2 * D + NC_PAD)            # x0, x_init, onehot (x2 bufs)
    need += 2 * 4 * bm * (D + NC_PAD)                # x_adv, logits     (x2 bufs)
    vmem_limit = int(min(max(2 * need, 16 << 20), 64 << 20))

    logits_p, x_adv = pl.pallas_call(
        kernel,
        out_shape=(jax.ShapeDtypeStruct((Bp, NC_PAD), jnp.float32),
                   jax.ShapeDtypeStruct((Bp, D), jnp.float32)),
        grid=(Bp // bm,),
        in_specs=[
            pl.BlockSpec((bm, D), lambda i: (i, 0)),        # x0
            pl.BlockSpec((bm, D), lambda i: (i, 0)),        # x_init
            pl.BlockSpec((D, NC_PAD), lambda i: (0, 0)),    # W (whole)
            pl.BlockSpec((1, NC_PAD), lambda i: (0, 0)),    # b (whole)
            pl.BlockSpec((bm, NC_PAD), lambda i: (i, 0)),   # one-hot
        ],
        out_specs=(
            pl.BlockSpec((bm, NC_PAD), lambda i: (i, 0)),   # logits
            pl.BlockSpec((bm, D), lambda i: (i, 0)),        # x_adv
        ),
        # x_init (operand 1) is dead after the kernel -> reuse its HBM buffer
        # for the adversarial output (output 1).
        input_output_aliases={1: 1},
        compiler_params=pltpu.CompilerParams(
            dimension_semantics=("parallel",),
            vmem_limit_bytes=vmem_limit),
    )(x0, x_init, Wp, bp, onehot)

    return logits_p[:B, :NUM_CLASSES], x_adv[:B].reshape(B, C, H, Wd)


if __name__ == "__main__":
    key = jax.random.PRNGKey(0)
    k_x, k_w, k_b, k_t, k_n = jax.random.split(key, 5)

    B, C, H, Wd = 2, 4, 16, 16
    D = C * H * Wd

    # deterministic synthetic inputs / parameters
    inputs = jax.random.uniform(k_x, (B, C, H, Wd), dtype=jnp.float32)      # "image" in [0,1]
    targets = jax.random.randint(k_t, (B,), 0, NUM_CLASSES, dtype=jnp.int32)
    W = 0.05 * jax.random.normal(k_w, (D, NUM_CLASSES), dtype=jnp.float32)  # linear model weight
    b = 0.01 * jax.random.normal(k_b, (NUM_CLASSES,), dtype=jnp.float32)    # linear model bias

    config = dict(random_start=True, step_size=2.0 / 255.0,
                  epsilon=8.0 / 255.0, num_steps=5, attack=True)

    logits, x_adv = attack_pgd(
        inputs, targets, W, b,
        epsilon=config["epsilon"], step_size=config["step_size"],
        num_steps=config["num_steps"], rand=config["random_start"],
        attack=config["attack"], key=k_n)

    jax.block_until_ready((logits, x_adv))

    # sanity: adversarial example stays in the eps-ball and in [0, 1]
    assert logits.shape == (B, NUM_CLASSES)
    assert x_adv.shape == (B, C, H, Wd)
    assert bool(jnp.all(jnp.abs(x_adv - inputs) <= config["epsilon"] + 1e-6))
    assert bool(jnp.all((x_adv >= 0.0) & (x_adv <= 1.0)))
    assert bool(jnp.all(jnp.isfinite(logits)))

    print("KERNEL_OK")
</pallas_src>

<mosaic_0001>
module attributes {stable_mosaic.version = 11 : i64} {
  func.func @_pgd_kernel(%arg0: i32, %arg1: memref<8x1024xf32, #tpu.memory_space<vmem>>, %arg2: memref<8x1024xf32, #tpu.memory_space<vmem>>, %arg3: memref<1024x128xf32, #tpu.memory_space<vmem>>, %arg4: memref<1x128xf32, #tpu.memory_space<vmem>>, %arg5: memref<8x128xf32, #tpu.memory_space<vmem>>, %arg6: memref<8x128xf32, #tpu.memory_space<vmem>>, %arg7: memref<8x1024xf32, #tpu.memory_space<vmem>>) attributes {dimension_semantics = [#tpu.dimension_semantics<parallel>], iteration_bounds = array<i64: 1>, scalar_prefetch = 0 : i64, scratch_operands = 0 : i64, tpu.core_type = #tpu.core_type<tc>, window_params = [{transform_indices = @transform_0, window_bounds = array<i64: 8, 1024>}, {transform_indices = @transform_1, window_bounds = array<i64: 8, 1024>}, {pipeline_mode = #tpu.pipeline_mode<synchronous>, transform_indices = @transform_2, window_bounds = array<i64: 1024, 128>}, {pipeline_mode = #tpu.pipeline_mode<synchronous>, transform_indices = @transform_3, window_bounds = array<i64: 1, 128>}, {transform_indices = @transform_4, window_bounds = array<i64: 8, 128>}, {transform_indices = @transform_5, window_bounds = array<i64: 8, 128>}, {transform_indices = @transform_6, window_bounds = array<i64: 8, 1024>}]} {
    %c0 = arith.constant 0 : index
    %c0_0 = arith.constant 0 : index
    %0 = vector.load %arg1[%c0, %c0_0] : memref<8x1024xf32, #tpu.memory_space<vmem>>, vector<8x1024xf32>
    %c0_1 = arith.constant 0 : index
    %c0_2 = arith.constant 0 : index
    %1 = vector.load %arg3[%c0_1, %c0_2] : memref<1024x128xf32, #tpu.memory_space<vmem>>, vector<1024x128xf32>
    %c0_3 = arith.constant 0 : index
    %c0_4 = arith.constant 0 : index
    %2 = vector.load %arg5[%c0_3, %c0_4] : memref<8x128xf32, #tpu.memory_space<vmem>>, vector<8x128xf32>
    %c0_5 = arith.constant 0 : index
    %c0_6 = arith.constant 0 : index
    %3 = vector.load %arg4[%c0_5, %c0_6] : memref<1x128xf32, #tpu.memory_space<vmem>>, vector<1x128xf32>
    %4 = vector.shape_cast %3 : vector<1x128xf32> to vector<1x128xf32>
    %5 = vector.broadcast %4 : vector<1x128xf32> to vector<8x128xf32>
    %cst = arith.constant 0.0313725509 : f32
    %6 = vector.broadcast %cst : f32 to vector<8x1024xf32>
    %7 = arith.subf %0, %6 : vector<8x1024xf32>
    %cst_7 = arith.constant 0.000000e+00 : f32
    %8 = vector.broadcast %cst_7 : f32 to vector<8x1024xf32>
    %9 = arith.maximumf %7, %8 : vector<8x1024xf32>
    %cst_8 = arith.constant 0.0313725509 : f32
    %10 = vector.broadcast %cst_8 : f32 to vector<8x1024xf32>
    %11 = arith.addf %0, %10 : vector<8x1024xf32>
    %cst_9 = arith.constant 1.000000e+00 : f32
    %12 = vector.broadcast %cst_9 : f32 to vector<8x1024xf32>
    %13 = arith.minimumf %11, %12 : vector<8x1024xf32>
    %c0_10 = arith.constant 0 : index
    %c0_11 = arith.constant 0 : index
    %14 = vector.load %arg2[%c0_10, %c0_11] : memref<8x1024xf32, #tpu.memory_space<vmem>>, vector<8x1024xf32>
    %c0_i32 = arith.constant 0 : i32
    %cst_12 = arith.constant dense<0.000000e+00> : vector<8x128xf32>
    %15 = tpu.matmul %14, %1, %cst_12 {dimension_numbers = #tpu.dot_dimension_numbers<[1], [0], [0], [1], [0, 0, 1, 1], [], []>} : vector<8x1024xf32>, vector<1024x128xf32>, vector<8x128xf32> -> vector<8x128xf32>
    %16 = arith.addf %15, %5 : vector<8x128xf32>
    %cst_13 = arith.constant dense<0xFF800000> : vector<8xf32>
    %17 = vector.multi_reduction <maximumf>, %16, %cst_13 [1] : vector<8x128xf32> to vector<8xf32>
    %18 = vector.shape_cast %17 : vector<8xf32> to vector<8x1xf32>
    %19 = vector.broadcast %18 : vector<8x1xf32> to vector<8x128xf32>
    %20 = arith.subf %16, %19 : vector<8x128xf32>
    %21 = math.exp %20 : vector<8x128xf32>
    %cst_14 = arith.constant dense<0.000000e+00> : vector<8xf32>
    %22 = vector.multi_reduction <add>, %21, %cst_14 [1] : vector<8x128xf32> to vector<8xf32>
    %23 = vector.shape_cast %22 : vector<8xf32> to vector<8x1xf32>
    %24 = tpu.reciprocal %23 {approx = true} : vector<8x1xf32> -> vector<8x1xf32>
    %25 = vector.broadcast %24 : vector<8x1xf32> to vector<8x128xf32>
    %26 = arith.mulf %21, %25 : vector<8x128xf32>
    %27 = arith.subf %26, %2 : vector<8x128xf32>
    %cst_15 = arith.constant dense<0.000000e+00> : vector<8x1024xf32>
    %28 = tpu.matmul %27, %1, %cst_15 {dimension_numbers = #tpu.dot_dimension_numbers<[1], [1], [0], [0], [0, 0, 1, 0], [], []>} : vector<8x128xf32>, vector<1024x128xf32>, vector<8x1024xf32> -> vector<8x1024xf32>
    %cst_16 = arith.constant 0.000000e+00 : f32
    %29 = vector.broadcast %cst_16 : f32 to vector<8x1024xf32>
    %30 = arith.cmpf ogt, %28, %29 : vector<8x1024xf32>
    %cst_17 = arith.constant 0.000000e+00 : f32
    %31 = vector.broadcast %cst_17 : f32 to vector<8x1024xf32>
    %32 = arith.cmpf olt, %28, %31 : vector<8x1024xf32>
    %cst_18 = arith.constant -0.00784313772 : f32
    %cst_19 = arith.constant 0.000000e+00 : f32
    %33 = vector.broadcast %cst_18 : f32 to vector<8x1024xf32>
    %34 = vector.broadcast %cst_19 : f32 to vector<8x1024xf32>
    %35 = arith.select %32, %33, %34 : vector<8x1024xi1>, vector<8x1024xf32>
    %cst_20 = arith.constant 0.00784313772 : f32
    %36 = vector.broadcast %cst_20 : f32 to vector<8x1024xf32>
    %37 = arith.select %30, %36, %35 : vector<8x1024xi1>, vector<8x1024xf32>
    %38 = arith.addf %14, %37 : vector<8x1024xf32>
    %39 = arith.maximumf %38, %9 : vector<8x1024xf32>
    %40 = arith.minimumf %39, %13 : vector<8x1024xf32>
    %c1_i32 = arith.constant 1 : i32
    %cst_21 = arith.constant dense<0.000000e+00> : vector<8x128xf32>
    %41 = tpu.matmul %40, %1, %cst_21 {dimension_numbers = #tpu.dot_dimension_numbers<[1], [0], [0], [1], [0, 0, 1, 1], [], []>} : vector<8x1024xf32>, vector<1024x128xf32>, vector<8x128xf32> -> vector<8x128xf32>
    %42 = arith.addf %41, %5 : vector<8x128xf32>
    %cst_22 = arith.constant dense<0xFF800000> : vector<8xf32>
    %43 = vector.multi_reduction <maximumf>, %42, %cst_22 [1] : vector<8x128xf32> to vector<8xf32>
    %44 = vector.shape_cast %43 : vector<8xf32> to vector<8x1xf32>
    %45 = vector.broadcast %44 : vector<8x1xf32> to vector<8x128xf32>
    %46 = arith.subf %42, %45 : vector<8x128xf32>
    %47 = math.exp %46 : vector<8x128xf32>
    %cst_23 = arith.constant dense<0.000000e+00> : vector<8xf32>
    %48 = vector.multi_reduction <add>, %47, %cst_23 [1] : vector<8x128xf32> to vector<8xf32>
    %49 = vector.shape_cast %48 : vector<8xf32> to vector<8x1xf32>
    %50 = tpu.reciprocal %49 {approx = true} : vector<8x1xf32> -> vector<8x1xf32>
    %51 = vector.broadcast %50 : vector<8x1xf32> to vector<8x128xf32>
    %52 = arith.mulf %47, %51 : vector<8x128xf32>
    %53 = arith.subf %52, %2 : vector<8x128xf32>
    %cst_24 = arith.constant dense<0.000000e+00> : vector<8x1024xf32>
    %54 = tpu.matmul %53, %1, %cst_24 {dimension_numbers = #tpu.dot_dimension_numbers<[1], [1], [0], [0], [0, 0, 1, 0], [], []>} : vector<8x128xf32>, vector<1024x128xf32>, vector<8x1024xf32> -> vector<8x1024xf32>
    %cst_25 = arith.constant 0.000000e+00 : f32
    %55 = vector.broadcast %cst_25 : f32 to vector<8x1024xf32>
    %56 = arith.cmpf ogt, %54, %55 : vector<8x1024xf32>
    %cst_26 = arith.constant 0.000000e+00 : f32
    %57 = vector.broadcast %cst_26 : f32 to vector<8x1024xf32>
    %58 = arith.cmpf olt, %54, %57 : vector<8x1024xf32>
    %cst_27 = arith.constant -0.00784313772 : f32
    %cst_28 = arith.constant 0.000000e+00 : f32
    %59 = vector.broadcast %cst_27 : f32 to vector<8x1024xf32>
    %60 = vector.broadcast %cst_28 : f32 to vector<8x1024xf32>
    %61 = arith.select %58, %59, %60 : vector<8x1024xi1>, vector<8x1024xf32>
    %cst_29 = arith.constant 0.00784313772 : f32
    %62 = vector.broadcast %cst_29 : f32 to vector<8x1024xf32>
    %63 = arith.select %56, %62, %61 : vector<8x1024xi1>, vector<8x1024xf32>
    %64 = arith.addf %40, %63 : vector<8x1024xf32>
    %65 = arith.maximumf %64, %9 : vector<8x1024xf32>
    %66 = arith.minimumf %65, %13 : vector<8x1024xf32>
    %c2_i32 = arith.constant 2 : i32
    %cst_30 = arith.constant dense<0.000000e+00> : vector<8x128xf32>
    %67 = tpu.matmul %66, %1, %cst_30 {dimension_numbers = #tpu.dot_dimension_numbers<[1], [0], [0], [1], [0, 0, 1, 1], [], []>} : vector<8x1024xf32>, vector<1024x128xf32>, vector<8x128xf32> -> vector<8x128xf32>
    %68 = arith.addf %67, %5 : vector<8x128xf32>
    %cst_31 = arith.constant dense<0xFF800000> : vector<8xf32>
    %69 = vector.multi_reduction <maximumf>, %68, %cst_31 [1] : vector<8x128xf32> to vector<8xf32>
    %70 = vector.shape_cast %69 : vector<8xf32> to vector<8x1xf32>
    %71 = vector.broadcast %70 : vector<8x1xf32> to vector<8x128xf32>
    %72 = arith.subf %68, %71 : vector<8x128xf32>
    %73 = math.exp %72 : vector<8x128xf32>
    %cst_32 = arith.constant dense<0.000000e+00> : vector<8xf32>
    %74 = vector.multi_reduction <add>, %73, %cst_32 [1] : vector<8x128xf32> to vector<8xf32>
    %75 = vector.shape_cast %74 : vector<8xf32> to vector<8x1xf32>
    %76 = tpu.reciprocal %75 {approx = true} : vector<8x1xf32> -> vector<8x1xf32>
    %77 = vector.broadcast %76 : vector<8x1xf32> to vector<8x128xf32>
    %78 = arith.mulf %73, %77 : vector<8x128xf32>
    %79 = arith.subf %78, %2 : vector<8x128xf32>
    %cst_33 = arith.constant dense<0.000000e+00> : vector<8x1024xf32>
    %80 = tpu.matmul %79, %1, %cst_33 {dimension_numbers = #tpu.dot_dimension_numbers<[1], [1], [0], [0], [0, 0, 1, 0], [], []>} : vector<8x128xf32>, vector<1024x128xf32>, vector<8x1024xf32> -> vector<8x1024xf32>
    %cst_34 = arith.constant 0.000000e+00 : f32
    %81 = vector.broadcast %cst_34 : f32 to vector<8x1024xf32>
    %82 = arith.cmpf ogt, %80, %81 : vector<8x1024xf32>
    %cst_35 = arith.constant 0.000000e+00 : f32
    %83 = vector.broadcast %cst_35 : f32 to vector<8x1024xf32>
    %84 = arith.cmpf olt, %80, %83 : vector<8x1024xf32>
    %cst_36 = arith.constant -0.00784313772 : f32
    %cst_37 = arith.constant 0.000000e+00 : f32
    %85 = vector.broadcast %cst_36 : f32 to vector<8x1024xf32>
    %86 = vector.broadcast %cst_37 : f32 to vector<8x1024xf32>
    %87 = arith.select %84, %85, %86 : vector<8x1024xi1>, vector<8x1024xf32>
    %cst_38 = arith.constant 0.00784313772 : f32
    %88 = vector.broadcast %cst_38 : f32 to vector<8x1024xf32>
    %89 = arith.select %82, %88, %87 : vector<8x1024xi1>, vector<8x1024xf32>
    %90 = arith.addf %66, %89 : vector<8x1024xf32>
    %91 = arith.maximumf %90, %9 : vector<8x1024xf32>
    %92 = arith.minimumf %91, %13 : vector<8x1024xf32>
    %c3_i32 = arith.constant 3 : i32
    %cst_39 = arith.constant dense<0.000000e+00> : vector<8x128xf32>
    %93 = tpu.matmul %92, %1, %cst_39 {dimension_numbers = #tpu.dot_dimension_numbers<[1], [0], [0], [1], [0, 0, 1, 1], [], []>} : vector<8x1024xf32>, vector<1024x128xf32>, vector<8x128xf32> -> vector<8x128xf32>
    %94 = arith.addf %93, %5 : vector<8x128xf32>
    %cst_40 = arith.constant dense<0xFF800000> : vector<8xf32>
    %95 = vector.multi_reduction <maximumf>, %94, %cst_40 [1] : vector<8x128xf32> to vector<8xf32>
    %96 = vector.shape_cast %95 : vector<8xf32> to vector<8x1xf32>
    %97 = vector.broadcast %96 : vector<8x1xf32> to vector<8x128xf32>
    %98 = arith.subf %94, %97 : vector<8x128xf32>
    %99 = math.exp %98 : vector<8x128xf32>
    %cst_41 = arith.constant dense<0.000000e+00> : vector<8xf32>
    %100 = vector.multi_reduction <add>, %99, %cst_41 [1] : vector<8x128xf32> to vector<8xf32>
    %101 = vector.shape_cast %100 : vector<8xf32> to vector<8x1xf32>
    %102 = tpu.reciprocal %101 {approx = true} : vector<8x1xf32> -> vector<8x1xf32>
    %103 = vector.broadcast %102 : vector<8x1xf32> to vector<8x128xf32>
    %104 = arith.mulf %99, %103 : vector<8x128xf32>
    %105 = arith.subf %104, %2 : vector<8x128xf32>
    %cst_42 = arith.constant dense<0.000000e+00> : vector<8x1024xf32>
    %106 = tpu.matmul %105, %1, %cst_42 {dimension_numbers = #tpu.dot_dimension_numbers<[1], [1], [0], [0], [0, 0, 1, 0], [], []>} : vector<8x128xf32>, vector<1024x128xf32>, vector<8x1024xf32> -> vector<8x1024xf32>
    %cst_43 = arith.constant 0.000000e+00 : f32
    %107 = vector.broadcast %cst_43 : f32 to vector<8x1024xf32>
    %108 = arith.cmpf ogt, %106, %107 : vector<8x1024xf32>
    %cst_44 = arith.constant 0.000000e+00 : f32
    %109 = vector.broadcast %cst_44 : f32 to vector<8x1024xf32>
    %110 = arith.cmpf olt, %106, %109 : vector<8x1024xf32>
    %cst_45 = arith.constant -0.00784313772 : f32
    %cst_46 = arith.constant 0.000000e+00 : f32
    %111 = vector.broadcast %cst_45 : f32 to vector<8x1024xf32>
    %112 = vector.broadcast %cst_46 : f32 to vector<8x1024xf32>
    %113 = arith.select %110, %111, %112 : vector<8x1024xi1>, vector<8x1024xf32>
    %cst_47 = arith.constant 0.00784313772 : f32
    %114 = vector.broadcast %cst_47 : f32 to vector<8x1024xf32>
    %115 = arith.select %108, %114, %113 : vector<8x1024xi1>, vector<8x1024xf32>
    %116 = arith.addf %92, %115 : vector<8x1024xf32>
    %117 = arith.maximumf %116, %9 : vector<8x1024xf32>
    %118 = arith.minimumf %117, %13 : vector<8x1024xf32>
    %c4_i32 = arith.constant 4 : i32
    %cst_48 = arith.constant dense<0.000000e+00> : vector<8x128xf32>
    %119 = tpu.matmul %118, %1, %cst_48 {dimension_numbers = #tpu.dot_dimension_numbers<[1], [0], [0], [1], [0, 0, 1, 1], [], []>} : vector<8x1024xf32>, vector<1024x128xf32>, vector<8x128xf32> -> vector<8x128xf32>
    %120 = arith.addf %119, %5 : vector<8x128xf32>
    %cst_49 = arith.constant dense<0xFF800000> : vector<8xf32>
    %121 = vector.multi_reduction <maximumf>, %120, %cst_49 [1] : vector<8x128xf32> to vector<8xf32>
    %122 = vector.shape_cast %121 : vector<8xf32> to vector<8x1xf32>
    %123 = vector.broadcast %122 : vector<8x1xf32> to vector<8x128xf32>
    %124 = arith.subf %120, %123 : vector<8x128xf32>
    %125 = math.exp %124 : vector<8x128xf32>
    %cst_50 = arith.constant dense<0.000000e+00> : vector<8xf32>
    %126 = vector.multi_reduction <add>, %125, %cst_50 [1] : vector<8x128xf32> to vector<8xf32>
    %127 = vector.shape_cast %126 : vector<8xf32> to vector<8x1xf32>
    %128 = tpu.reciprocal %127 {approx = true} : vector<8x1xf32> -> vector<8x1xf32>
    %129 = vector.broadcast %128 : vector<8x1xf32> to vector<8x128xf32>
    %130 = arith.mulf %125, %129 : vector<8x128xf32>
    %131 = arith.subf %130, %2 : vector<8x128xf32>
    %cst_51 = arith.constant dense<0.000000e+00> : vector<8x1024xf32>
    %132 = tpu.matmul %131, %1, %cst_51 {dimension_numbers = #tpu.dot_dimension_numbers<[1], [1], [0], [0], [0, 0, 1, 0], [], []>} : vector<8x128xf32>, vector<1024x128xf32>, vector<8x1024xf32> -> vector<8x1024xf32>
    %cst_52 = arith.constant 0.000000e+00 : f32
    %133 = vector.broadcast %cst_52 : f32 to vector<8x1024xf32>
    %134 = arith.cmpf ogt, %132, %133 : vector<8x1024xf32>
    %cst_53 = arith.constant 0.000000e+00 : f32
    %135 = vector.broadcast %cst_53 : f32 to vector<8x1024xf32>
    %136 = arith.cmpf olt, %132, %135 : vector<8x1024xf32>
    %cst_54 = arith.constant -0.00784313772 : f32
    %cst_55 = arith.constant 0.000000e+00 : f32
    %137 = vector.broadcast %cst_54 : f32 to vector<8x1024xf32>
    %138 = vector.broadcast %cst_55 : f32 to vector<8x1024xf32>
    %139 = arith.select %136, %137, %138 : vector<8x1024xi1>, vector<8x1024xf32>
    %cst_56 = arith.constant 0.00784313772 : f32
    %140 = vector.broadcast %cst_56 : f32 to vector<8x1024xf32>
    %141 = arith.select %134, %140, %139 : vector<8x1024xi1>, vector<8x1024xf32>
    %142 = arith.addf %118, %141 : vector<8x1024xf32>
    %143 = arith.maximumf %142, %9 : vector<8x1024xf32>
    %144 = arith.minimumf %143, %13 : vector<8x1024xf32>
    %c0_57 = arith.constant 0 : index
    %c0_58 = arith.constant 0 : index
    %145 = vector.load %arg7[%c0_57, %c0_58] : memref<8x1024xf32, #tpu.memory_space<vmem>>, vector<8x1024xf32>
    tpu.vector_store %arg7[%c0_57, %c0_58], %144 {strides = array<i32>} : memref<8x1024xf32, #tpu.memory_space<vmem>>, vector<8x1024xf32>,
    %cst_59 = arith.constant dense<0.000000e+00> : vector<8x128xf32>
    %146 = tpu.matmul %144, %1, %cst_59 {dimension_numbers = #tpu.dot_dimension_numbers<[1], [0], [0], [1], [0, 0, 1, 1], [], []>} : vector<8x1024xf32>, vector<1024x128xf32>, vector<8x128xf32> -> vector<8x128xf32>
    %147 = arith.addf %146, %5 : vector<8x128xf32>
    %c0_60 = arith.constant 0 : index
    %c0_61 = arith.constant 0 : index
    %148 = vector.load %arg6[%c0_60, %c0_61] : memref<8x128xf32, #tpu.memory_space<vmem>>, vector<8x128xf32>
    tpu.vector_store %arg6[%c0_60, %c0_61], %147 {strides = array<i32>} : memref<8x128xf32, #tpu.memory_space<vmem>>, vector<8x128xf32>,
    return
  }
  func.func @transform_0(%arg0: i32) -> (i32, i32) {
    %c0_i32 = arith.constant 0 : i32
    %c0_i32_0 = arith.constant 0 : i32
    return %arg0, %c0_i32 : i32, i32
  }
  func.func @transform_1(%arg0: i32) -> (i32, i32) {
    %c0_i32 = arith.constant 0 : i32
    %c0_i32_0 = arith.constant 0 : i32
    return %arg0, %c0_i32 : i32, i32
  }
  func.func @transform_2(%arg0: i32) -> (i32, i32) {
    %c0_i32 = arith.constant 0 : i32
    %c0_i32_0 = arith.constant 0 : i32
    %c0_i32_1 = arith.constant 0 : i32
    return %c0_i32, %c0_i32_0 : i32, i32
  }
  func.func @transform_3(%arg0: i32) -> (i32, i32) {
    %c0_i32 = arith.constant 0 : i32
    %c0_i32_0 = arith.constant 0 : i32
    %c0_i32_1 = arith.constant 0 : i32
    return %c0_i32, %c0_i32_0 : i32, i32
  }
  func.func @transform_4(%arg0: i32) -> (i32, i32) {
    %c0_i32 = arith.constant 0 : i32
    %c0_i32_0 = arith.constant 0 : i32
    return %arg0, %c0_i32 : i32, i32
  }
  func.func @transform_5(%arg0: i32) -> (i32, i32) {
    %c0_i32 = arith.constant 0 : i32
    %c0_i32_0 = arith.constant 0 : i32
    return %arg0, %c0_i32 : i32, i32
  }
  func.func @transform_6(%arg0: i32) -> (i32, i32) {
    %c0_i32 = arith.constant 0 : i32
    %c0_i32_0 = arith.constant 0 : i32
    return %arg0, %c0_i32 : i32, i32
  }
}

</mosaic_0001>

<llo_original>
// kernel: tpu_custom_call.1
$region0: #{tpu_custom_call.1}
  #allocation0 [shape = 'u32[]', space=smem, size = 0x4, offset = 0x4, fixed_abs, tag = 'smem constant byte address 0x4 - core index']
  #allocation1 [shape = 'u32[72,128]{1,0:T(1,128)}', space=vmem, size = 0x9000, scoped, tag = 'internal scratch']
  %s0 = inlined_call_operand.vmem [shape: f32[8,1024], index: 0, kind: input, shape index: {}]
  %s1 = inlined_call_operand.hbm [shape: f32[8,1024], index: 1, kind: input, shape index: {}, may-alias: {1,6}]
  %s2 = inlined_call_operand.hbm [shape: f32[1024,128], index: 2, kind: input, shape index: {}]
  %s3 = inlined_call_operand.vmem [shape: f32[1,128], index: 3, kind: input, shape index: {}]
  %s4 = inlined_call_operand.vmem [shape: f32[8,128], index: 4, kind: input, shape index: {}]
  %s5 = inlined_call_operand.hbm [shape: f32[8,128], index: 5, kind: output, shape index: {0}]
  %s6 = inlined_call_operand.hbm [shape: f32[8,1024], index: 6, kind: output, shape index: {1}, may-alias: {1,6}]
  %7 = xla_tuple %s5, %s6
  %s8 = sld [smem:[#allocation0]]
  $region46: #{tpu_custom_call.1} parent=0
    _
  %s10 = ssub.s32 1, %s8
  %s11 = scalar_select 0, %s10, %s8
  $region1: #{tpu_custom_call.1} parent=0
    #allocation2 [shape = 'u8[32768]{0}', space=vmem, size = 0x8000, scoped, tag = 'input window, operand 1, single buffered']
    #allocation3 [shape = 's32[1]{0}', space=sflag, size = 0x4, scoped, tag = 'scoped memory for tpu_custom_call.1']
    #allocation4 [shape = 's32[1]{0}', space=sflag, size = 0x4, scoped, tag = 'scoped memory for tpu_custom_call.1']
    #allocation5 [shape = 'u8[524288]{0}', space=vmem, size = 0x80000, scoped, tag = 'input window, operand 2, single buffered']
    #allocation6 [shape = 's32[1]{0}', space=sflag, size = 0x4, scoped, tag = 'scoped memory for tpu_custom_call.1']
    #allocation7 [shape = 'u8[4096]{0}', space=vmem, size = 0x1000, scoped, tag = 'output window, operand 0, single buffered']
    #allocation8 [shape = 'u8[32768]{0}', space=vmem, size = 0x8000, scoped, tag = 'output window, operand 1, single buffered']
    #allocation9 [shape = 's32[1]{0}', space=sflag, size = 0x4, scoped, tag = 'scoped memory for tpu_custom_call.1']
    %12 = vsyncpa [#allocation3], 0
    %13 = vsyncpa [#allocation6], 0
    %14 = vsyncpa [#allocation4], 0
    %15 = vsyncpa [#allocation9], 0
    // Predicated region
    $region2: #{tpu_custom_call.1} parent=1 // pred_check
      _
    $region3: #{tpu_custom_call.1} parent=1 // pred_check_branch
      %17 = sbr.rel (0) target = $region5
    $region4: #{tpu_custom_call.1} parent=1 // pred_region
      _
    $region5: #{tpu_custom_call.1} parent=1 // pred_fallthru
      _
    // Predicated region
    $region6: #{tpu_custom_call.1} parent=1 // pred_check
      _
    $region7: #{tpu_custom_call.1} parent=1 // pred_check_branch
      %19 = sbr.rel (0) target = $region9
    $region8: #{tpu_custom_call.1} parent=1 // pred_region
      %21 = vsyncadd [#allocation3], 0
      %s23 = sshll.u32 %s1, 4
      %s24 = int_to_ptr.hbm [resolvable:$true] %s23
      %s25 = sshll.u32 [#allocation2], 4
      %s26 = int_to_ptr.vmem [resolvable:$true] %s25
      %28 = dma.hbm_to_vmem [thread:$0]  %s24, 1024, %s26, [#allocation3]
    $region9: #{tpu_custom_call.1} parent=1 // pred_fallthru
      _
    // Predicated region
    $region10: #{tpu_custom_call.1} parent=1 // pred_check
      _
    $region11: #{tpu_custom_call.1} parent=1 // pred_check_branch
      %30 = sbr.rel (0) target = $region13
    $region12: #{tpu_custom_call.1} parent=1 // pred_region
      %32 = vsyncadd [#allocation6], 0
      %s33 = sshll.u32 %s2, 4
      %s34 = int_to_ptr.hbm [resolvable:$true] %s33
      %s35 = sshll.u32 [#allocation5], 4
      %s36 = int_to_ptr.vmem [resolvable:$true] %s35
      %41 = dma.hbm_to_vmem [thread:$0]  %s34, 16384, %s36, [#allocation6], 128, 128, 8
    $region13: #{tpu_custom_call.1} parent=1 // pred_fallthru
      _
    // Predicated region
    $region14: #{tpu_custom_call.1} parent=1 // pred_check
      _
    $region15: #{tpu_custom_call.1} parent=1 // pred_check_branch
      %43 = sbr.rel (0) target = $region17
    $region16: #{tpu_custom_call.1} parent=1 // pred_region
      _
    $region17: #{tpu_custom_call.1} parent=1 // pred_fallthru
      _
    // Predicated region
    $region18: #{tpu_custom_call.1} parent=1 // pred_check
      _
    $region19: #{tpu_custom_call.1} parent=1 // pred_check_branch
      %45 = sbr.rel (0) target = $region21
    $region20: #{tpu_custom_call.1} parent=1 // pred_region
      _
    $region21: #{tpu_custom_call.1} parent=1 // pred_fallthru
      _
    // Predicated region
    $region22: #{tpu_custom_call.1} parent=1 // pred_check
      _
    $region23: #{tpu_custom_call.1} parent=1 // pred_check_branch
      %47 = sbr.rel (0) target = $region25
    $region24: #{tpu_custom_call.1} parent=1 // pred_region
      %49 = dma.done [#allocation3], 1024
    $region25: #{tpu_custom_call.1} parent=1 // pred_fallthru
      _
    // Predicated region
    $region26: #{tpu_custom_call.1} parent=1 // pred_check
      _
    $region27: #{tpu_custom_call.1} parent=1 // pred_check_branch
      %51 = sbr.rel (0) target = $region29
    $region28: #{tpu_custom_call.1} parent=1 // pred_region
      %53 = dma.done [#allocation6], 16384
    $region29: #{tpu_custom_call.1} parent=1 // pred_fallthru
      _
    %v54 = vld [vmem:[%s0] sm:$0xff]
    %v55 = vld [vmem:[%s0 + $0x8] sm:$0xff]
    %v56 = vld [vmem:[%s0 + $0x10] sm:$0xff]
    %v57 = vld [vmem:[%s0 + $0x18] sm:$0xff]
    %v58 = vld [vmem:[%s0 + $0x20] sm:$0xff]
    %v59 = vld [vmem:[%s0 + $0x28] sm:$0xff]
    %v60 = vld [vmem:[%s0 + $0x30] sm:$0xff]
    %v61 = vld [vmem:[%s0 + $0x38] sm:$0xff]
    %v62 = vld [vmem:[#allocation5] sm:$0xff]
    %v63 = vld [vmem:[#allocation5 + $0x8] sm:$0xff]
    %v64 = vld [vmem:[#allocation5 + $0x10] sm:$0xff]
    %v65 = vld [vmem:[#allocation5 + $0x18] sm:$0xff]
    %v66 = vld [vmem:[#allocation5 + $0x20] sm:$0xff]
    %v67 = vld [vmem:[#allocation5 + $0x28] sm:$0xff]
    %v68 = vld [vmem:[#allocation5 + $0x30] sm:$0xff]
    %v69 = vld [vmem:[#allocation5 + $0x38] sm:$0xff]
    %v70 = vld [vmem:[#allocation5 + $0x40] sm:$0xff]
    %v71 = vld [vmem:[#allocation5 + $0x48] sm:$0xff]
    %v72 = vld [vmem:[#allocation5 + $0x50] sm:$0xff]
    %v73 = vld [vmem:[#allocation5 + $0x58] sm:$0xff]
    %v74 = vld [vmem:[#allocation5 + $0x60] sm:$0xff]
    %v75 = vld [vmem:[#allocation5 + $0x68] sm:$0xff]
    %v76 = vld [vmem:[#allocation5 + $0x70] sm:$0xff]
    %v77 = vld [vmem:[#allocation5 + $0x78] sm:$0xff]
    %v78 = vld [vmem:[#allocation5 + $0x80] sm:$0xff]
    %v79 = vld [vmem:[#allocation5 + $0x88] sm:$0xff]
    %v80 = vld [vmem:[#allocation5 + $0x90] sm:$0xff]
    %v81 = vld [vmem:[#allocation5 + $0x98] sm:$0xff]
    %v82 = vld [vmem:[#allocation5 + $0xa0] sm:$0xff]
    %v83 = vld [vmem:[#allocation5 + $0xa8] sm:$0xff]
    %v84 = vld [vmem:[#allocation5 + $0xb0] sm:$0xff]
    %v85 = vld [vmem:[#allocation5 + $0xb8] sm:$0xff]
    %v86 = vld [vmem:[#allocation5 + $0xc0] sm:$0xff]
    %v87 = vld [vmem:[#allocation5 + $0xc8] sm:$0xff]
    %v88 = vld [vmem:[#allocation5 + $0xd0] sm:$0xff]
    %v89 = vld [vmem:[#allocation5 + $0xd8] sm:$0xff]
    %v90 = vld [vmem:[#allocation5 + $0xe0] sm:$0xff]
    %v91 = vld [vmem:[#allocation5 + $0xe8] sm:$0xff]
    %v92 = vld [vmem:[#allocation5 + $0xf0] sm:$0xff]
    %v93 = vld [vmem:[#allocation5 + $0xf8] sm:$0xff]
    %v94 = vld [vmem:[#allocation5 + $0x100] sm:$0xff]
    %v95 = vld [vmem:[#allocation5 + $0x108] sm:$0xff]
    %v96 = vld [vmem:[#allocation5 + $0x110] sm:$0xff]
    %v97 = vld [vmem:[#allocation5 + $0x118] sm:$0xff]
    %v98 = vld [vmem:[#allocation5 + $0x120] sm:$0xff]
    %v99 = vld [vmem:[#allocation5 + $0x128] sm:$0xff]
    %v100 = vld [vmem:[#allocation5 + $0x130] sm:$0xff]
    %v101 = vld [vmem:[#allocation5 + $0x138] sm:$0xff]
    %v102 = vld [vmem:[#allocation5 + $0x140] sm:$0xff]
    %v103 = vld [vmem:[#allocation5 + $0x148] sm:$0xff]
    %v104 = vld [vmem:[#allocation5 + $0x150] sm:$0xff]
    %v105 = vld [vmem:[#allocation5 + $0x158] sm:$0xff]
    %v106 = vld [vmem:[#allocation5 + $0x160] sm:$0xff]
    %v107 = vld [vmem:[#allocation5 + $0x168] sm:$0xff]
    %v108 = vld [vmem:[#allocation5 + $0x170] sm:$0xff]
    %v109 = vld [vmem:[#allocation5 + $0x178] sm:$0xff]
    %v110 = vld [vmem:[#allocation5 + $0x180] sm:$0xff]
    %v111 = vld [vmem:[#allocation5 + $0x188] sm:$0xff]
    %v112 = vld [vmem:[#allocation5 + $0x190] sm:$0xff]
    %v113 = vld [vmem:[#allocation5 + $0x198] sm:$0xff]
    %v114 = vld [vmem:[#allocation5 + $0x1a0] sm:$0xff]
    %v115 = vld [vmem:[#allocation5 + $0x1a8] sm:$0xff]
    %v116 = vld [vmem:[#allocation5 + $0x1b0] sm:$0xff]
    %v117 = vld [vmem:[#allocation5 + $0x1b8] sm:$0xff]
    %v118 = vld [vmem:[#allocation5 + $0x1c0] sm:$0xff]
    %v119 = vld [vmem:[#allocation5 + $0x1c8] sm:$0xff]
    %v120 = vld [vmem:[#allocation5 + $0x1d0] sm:$0xff]
    %v121 = vld [vmem:[#allocation5 + $0x1d8] sm:$0xff]
    %v122 = vld [vmem:[#allocation5 + $0x1e0] sm:$0xff]
    %v123 = vld [vmem:[#allocation5 + $0x1e8] sm:$0xff]
    %v124 = vld [vmem:[#allocation5 + $0x1f0] sm:$0xff]
    %v125 = vld [vmem:[#allocation5 + $0x1f8] sm:$0xff]
    %v126 = vld [vmem:[#allocation5 + $0x200] sm:$0xff]
    %v127 = vld [vmem:[#allocation5 + $0x208] sm:$0xff]
    %v128 = vld [vmem:[#allocation5 + $0x210] sm:$0xff]
    %v129 = vld [vmem:[#allocation5 + $0x218] sm:$0xff]
    %v130 = vld [vmem:[#allocation5 + $0x220] sm:$0xff]
    %v131 = vld [vmem:[#allocation5 + $0x228] sm:$0xff]
    %v132 = vld [vmem:[#allocation5 + $0x230] sm:$0xff]
    %v133 = vld [vmem:[#allocation5 + $0x238] sm:$0xff]
    %v134 = vld [vmem:[#allocation5 + $0x240] sm:$0xff]
    %v135 = vld [vmem:[#allocation5 + $0x248] sm:$0xff]
    %v136 = vld [vmem:[#allocation5 + $0x250] sm:$0xff]
    %v137 = vld [vmem:[#allocation5 + $0x258] sm:$0xff]
    %v138 = vld [vmem:[#allocation5 + $0x260] sm:$0xff]
    %v139 = vld [vmem:[#allocation5 + $0x268] sm:$0xff]
    %v140 = vld [vmem:[#allocation5 + $0x270] sm:$0xff]
    %v141 = vld [vmem:[#allocation5 + $0x278] sm:$0xff]
    %v142 = vld [vmem:[#allocation5 + $0x280] sm:$0xff]
    %v143 = vld [vmem:[#allocation5 + $0x288] sm:$0xff]
    %v144 = vld [vmem:[#allocation5 + $0x290] sm:$0xff]
    %v145 = vld [vmem:[#allocation5 + $0x298] sm:$0xff]
    %v146 = vld [vmem:[#allocation5 + $0x2a0] sm:$0xff]
    %v147 = vld [vmem:[#allocation5 + $0x2a8] sm:$0xff]
    %v148 = vld [vmem:[#allocation5 + $0x2b0] sm:$0xff]
    %v149 = vld [vmem:[#allocation5 + $0x2b8] sm:$0xff]
    %v150 = vld [vmem:[#allocation5 + $0x2c0] sm:$0xff]
    %v151 = vld [vmem:[#allocation5 + $0x2c8] sm:$0xff]
    %v152 = vld [vmem:[#allocation5 + $0x2d0] sm:$0xff]
    %v153 = vld [vmem:[#allocation5 + $0x2d8] sm:$0xff]
    %v154 = vld [vmem:[#allocation5 + $0x2e0] sm:$0xff]
    %v155 = vld [vmem:[#allocation5 + $0x2e8] sm:$0xff]
    %v156 = vld [vmem:[#allocation5 + $0x2f0] sm:$0xff]
    %v157 = vld [vmem:[#allocation5 + $0x2f8] sm:$0xff]
    %v158 = vld [vmem:[#allocation5 + $0x300] sm:$0xff]
    %v159 = vld [vmem:[#allocation5 + $0x308] sm:$0xff]
    %v160 = vld [vmem:[#allocation5 + $0x310] sm:$0xff]
    %v161 = vld [vmem:[#allocation5 + $0x318] sm:$0xff]
    %v162 = vld [vmem:[#allocation5 + $0x320] sm:$0xff]
    %v163 = vld [vmem:[#allocation5 + $0x328] sm:$0xff]
    %v164 = vld [vmem:[#allocation5 + $0x330] sm:$0xff]
    %v165 = vld [vmem:[#allocation5 + $0x338] sm:$0xff]
    %v166 = vld [vmem:[#allocation5 + $0x340] sm:$0xff]
    %v167 = vld [vmem:[#allocation5 + $0x348] sm:$0xff]
    %v168 = vld [vmem:[#allocation5 + $0x350] sm:$0xff]
    %v169 = vld [vmem:[#allocation5 + $0x358] sm:$0xff]
    %v170 = vld [vmem:[#allocation5 + $0x360] sm:$0xff]
    %v171 = vld [vmem:[#allocation5 + $0x368] sm:$0xff]
    %v172 = vld [vmem:[#allocation5 + $0x370] sm:$0xff]
    %v173 = vld [vmem:[#allocation5 + $0x378] sm:$0xff]
    %v174 = vld [vmem:[#allocation5 + $0x380] sm:$0xff]
    %v175 = vld [vmem:[#allocation5 + $0x388] sm:$0xff]
    %v176 = vld [vmem:[#allocation5 + $0x390] sm:$0xff]
    %v177 = vld [vmem:[#allocation5 + $0x398] sm:$0xff]
    %v178 = vld [vmem:[#allocation5 + $0x3a0] sm:$0xff]
    %v179 = vld [vmem:[#allocation5 + $0x3a8] sm:$0xff]
    %v180 = vld [vmem:[#allocation5 + $0x3b0] sm:$0xff]
    %v181 = vld [vmem:[#allocation5 + $0x3b8] sm:$0xff]
    %v182 = vld [vmem:[#allocation5 + $0x3c0] sm:$0xff]
    %v183 = vld [vmem:[#allocation5 + $0x3c8] sm:$0xff]
    %v184 = vld [vmem:[#allocation5 + $0x3d0] sm:$0xff]
    %v185 = vld [vmem:[#allocation5 + $0x3d8] sm:$0xff]
    %v186 = vld [vmem:[#allocation5 + $0x3e0] sm:$0xff]
    %v187 = vld [vmem:[#allocation5 + $0x3e8] sm:$0xff]
    %v188 = vld [vmem:[#allocation5 + $0x3f0] sm:$0xff]
    %v189 = vld [vmem:[#allocation5 + $0x3f8] sm:$0xff]
    %v190 = vld [vmem:[%s4] sm:$0xff]
    %v191 = vld [vmem:[%s3] sm:$0x1]
    %v193 = vperm.slane %v191, 0
    %v195 = vsub.f32 %v54, 0.03137255
    %v196 = vsub.f32 %v55, 0.03137255
    %v197 = vsub.f32 %v56, 0.03137255
    %v198 = vsub.f32 %v57, 0.03137255
    %v199 = vsub.f32 %v58, 0.03137255
    %v200 = vsub.f32 %v59, 0.03137255
    %v201 = vsub.f32 %v60, 0.03137255
    %v202 = vsub.f32 %v61, 0.03137255
    %v203 = vmax.f32 %v195, 0.0
    %v204 = vmax.f32 %v196, 0.0
    %v205 = vmax.f32 %v197, 0.0
    %v206 = vmax.f32 %v198, 0.0
    %v207 = vmax.f32 %v199, 0.0
    %v208 = vmax.f32 %v200, 0.0
    %v209 = vmax.f32 %v201, 0.0
    %v210 = vmax.f32 %v202, 0.0
    %v211 = vadd.f32 %v54, 0.03137255
    %v212 = vadd.f32 %v55, 0.03137255
    %v213 = vadd.f32 %v56, 0.03137255
    %v214 = vadd.f32 %v57, 0.03137255
    %v215 = vadd.f32 %v58, 0.03137255
    %v216 = vadd.f32 %v59, 0.03137255
    %v217 = vadd.f32 %v60, 0.03137255
    %v218 = vadd.f32 %v61, 0.03137255
    %v219 = vmin.f32 %v211, 1.0
    %v220 = vmin.f32 %v212, 1.0
    %v221 = vmin.f32 %v213, 1.0
    %v222 = vmin.f32 %v214, 1.0
    %v223 = vmin.f32 %v215, 1.0
    %v224 = vmin.f32 %v216, 1.0
    %v225 = vmin.f32 %v217, 1.0
    %v226 = vmin.f32 %v218, 1.0
    %v227 = vld [vmem:[#allocation2] sm:$0xff]
    %v228 = vld [vmem:[#allocation2 + $0x8] sm:$0xff]
    %v229 = vld [vmem:[#allocation2 + $0x10] sm:$0xff]
    %v230 = vld [vmem:[#allocation2 + $0x18] sm:$0xff]
    %v231 = vld [vmem:[#allocation2 + $0x20] sm:$0xff]
    %v232 = vld [vmem:[#allocation2 + $0x28] sm:$0xff]
    %v233 = vld [vmem:[#allocation2 + $0x30] sm:$0xff]
    %v234 = vld [vmem:[#allocation2 + $0x38] sm:$0xff]
    %235 = vmatpush.msra.mxu0 %v77
    %236 = vmatpush.msra.mxu0 %v76
    %237 = vmatpush.msra.mxu0 %v75
    %238 = vmatpush.msra.mxu0 %v74
    %239 = vmatpush.msra.mxu0 %v73
    %240 = vmatpush.msra.mxu0 %v72
    %241 = vmatpush.msra.mxu0 %v71
    %242 = vmatpush.msra.mxu0 %v70
    %243 = vmatpush.msra.mxu0 %v69
    %244 = vmatpush.msra.mxu0 %v68
    %245 = vmatpush.msra.mxu0 %v67
    %246 = vmatpush.msra.mxu0 %v66
    %247 = vmatpush.msra.mxu0 %v65
    %248 = vmatpush.msra.mxu0 %v64
    %249 = vmatpush.msra.mxu0 %v63
    %250 = vmatpush.msra.mxu0 %v62
    %251 = vmatmul.f32.gmra.mxu0 %v227
    %v252 = vpop.f32.mrf.mxu0
    %v253 = vadd.f32 %v193, %v252
    %254 = vdwg.mxu0
    %255 = vmatpush.msra.mxu0 %v93
    %256 = vmatpush.msra.mxu0 %v92
    %257 = vmatpush.msra.mxu0 %v91
    %258 = vmatpush.msra.mxu0 %v90
    %259 = vmatpush.msra.mxu0 %v89
    %260 = vmatpush.msra.mxu0 %v88
    %261 = vmatpush.msra.mxu0 %v87
    %262 = vmatpush.msra.mxu0 %v86
    %263 = vmatpush.msra.mxu0 %v85
    %264 = vmatpush.msra.mxu0 %v84
    %265 = vmatpush.msra.mxu0 %v83
    %266 = vmatpush.msra.mxu0 %v82
    %267 = vmatpush.msra.mxu0 %v81
    %268 = vmatpush.msra.mxu0 %v80
    %269 = vmatpush.msra.mxu0 %v79
    %270 = vmatpush.msra.mxu0 %v78
    %271 = vmatmul.f32.gmra.mxu0 %v228
    %v272 = vpop.f32.mrf.mxu0
    %v273 = vadd.f32 %v253, %v272
    %274 = vdwg.mxu0
    %275 = vmatpush.msra.mxu0 %v109
    %276 = vmatpush.msra.mxu0 %v108
    %277 = vmatpush.msra.mxu0 %v107
    %278 = vmatpush.msra.mxu0 %v106
    %279 = vmatpush.msra.mxu0 %v105
    %280 = vmatpush.msra.mxu0 %v104
    %281 = vmatpush.msra.mxu0 %v103
    %282 = vmatpush.msra.mxu0 %v102
    %283 = vmatpush.msra.mxu0 %v101
    %284 = vmatpush.msra.mxu0 %v100
    %285 = vmatpush.msra.mxu0 %v99
    %286 = vmatpush.msra.mxu0 %v98
    %287 = vmatpush.msra.mxu0 %v97
    %288 = vmatpush.msra.mxu0 %v96
    %289 = vmatpush.msra.mxu0 %v95
    %290 = vmatpush.msra.mxu0 %v94
    %291 = vmatmul.f32.gmra.mxu0 %v229
    %v292 = vpop.f32.mrf.mxu0
    %v293 = vadd.f32 %v273, %v292
    %294 = vdwg.mxu0
    %295 = vmatpush.msra.mxu0 %v125
    %296 = vmatpush.msra.mxu0 %v124
    %297 = vmatpush.msra.mxu0 %v123
    %298 = vmatpush.msra.mxu0 %v122
    %299 = vmatpush.msra.mxu0 %v121
    %300 = vmatpush.msra.mxu0 %v120
    %301 = vmatpush.msra.mxu0 %v119
    %302 = vmatpush.msra.mxu0 %v118
    %303 = vmatpush.msra.mxu0 %v117
    %304 = vmatpush.msra.mxu0 %v116
    %305 = vmatpush.msra.mxu0 %v115
    %306 = vmatpush.msra.mxu0 %v114
    %307 = vmatpush.msra.mxu0 %v113
    %308 = vmatpush.msra.mxu0 %v112
    %309 = vmatpush.msra.mxu0 %v111
    %310 = vmatpush.msra.mxu0 %v110
    %311 = vmatmul.f32.gmra.mxu0 %v230
    %v312 = vpop.f32.mrf.mxu0
    %v313 = vadd.f32 %v293, %v312
    %314 = vdwg.mxu0
    %315 = vmatpush.msra.mxu0 %v141
    %316 = vmatpush.msra.mxu0 %v140
    %317 = vmatpush.msra.mxu0 %v139
    %318 = vmatpush.msra.mxu0 %v138
    %319 = vmatpush.msra.mxu0 %v137
    %320 = vmatpush.msra.mxu0 %v136
    %321 = vmatpush.msra.mxu0 %v135
    %322 = vmatpush.msra.mxu0 %v134
    %323 = vmatpush.msra.mxu0 %v133
    %324 = vmatpush.msra.mxu0 %v132
    %325 = vmatpush.msra.mxu0 %v131
    %326 = vmatpush.msra.mxu0 %v130
    %327 = vmatpush.msra.mxu0 %v129
    %328 = vmatpush.msra.mxu0 %v128
    %329 = vmatpush.msra.mxu0 %v127
    %330 = vmatpush.msra.mxu0 %v126
    %331 = vmatmul.f32.gmra.mxu0 %v231
    %v332 = vpop.f32.mrf.mxu0
    %v333 = vadd.f32 %v313, %v332
    %334 = vdwg.mxu0
    %335 = vmatpush.msra.mxu0 %v157
    %336 = vmatpush.msra.mxu0 %v156
    %337 = vmatpush.msra.mxu0 %v155
    %338 = vmatpush.msra.mxu0 %v154
    %339 = vmatpush.msra.mxu0 %v153
    %340 = vmatpush.msra.mxu0 %v152
    %341 = vmatpush.msra.mxu0 %v151
    %342 = vmatpush.msra.mxu0 %v150
    %343 = vmatpush.msra.mxu0 %v149
    %344 = vmatpush.msra.mxu0 %v148
    %345 = vmatpush.msra.mxu0 %v147
    %346 = vmatpush.msra.mxu0 %v146
    %347 = vmatpush.msra.mxu0 %v145
    %348 = vmatpush.msra.mxu0 %v144
    %349 = vmatpush.msra.mxu0 %v143
    %350 = vmatpush.msra.mxu0 %v142
    %351 = vmatmul.f32.gmra.mxu0 %v232
    %v352 = vpop.f32.mrf.mxu0
    %v353 = vadd.f32 %v333, %v352
    %354 = vdwg.mxu0
    %355 = vmatpush.msra.mxu0 %v173
    %356 = vmatpush.msra.mxu0 %v172
    %357 = vmatpush.msra.mxu0 %v171
    %358 = vmatpush.msra.mxu0 %v170
    %359 = vmatpush.msra.mxu0 %v169
    %360 = vmatpush.msra.mxu0 %v168
    %361 = vmatpush.msra.mxu0 %v167
    %362 = vmatpush.msra.mxu0 %v166
    %363 = vmatpush.msra.mxu0 %v165
    %364 = vmatpush.msra.mxu0 %v164
    %365 = vmatpush.msra.mxu0 %v163
    %366 = vmatpush.msra.mxu0 %v162
    %367 = vmatpush.msra.mxu0 %v161
    %368 = vmatpush.msra.mxu0 %v160
    %369 = vmatpush.msra.mxu0 %v159
    %370 = vmatpush.msra.mxu0 %v158
    %371 = vmatmul.f32.gmra.mxu0 %v233
    %v372 = vpop.f32.mrf.mxu0
    %v373 = vadd.f32 %v353, %v372
    %374 = vdwg.mxu0
    %375 = vmatpush.msra.mxu0 %v189
    %376 = vmatpush.msra.mxu0 %v188
    %377 = vmatpush.msra.mxu0 %v187
    %378 = vmatpush.msra.mxu0 %v186
    %379 = vmatpush.msra.mxu0 %v185
    %380 = vmatpush.msra.mxu0 %v184
    %381 = vmatpush.msra.mxu0 %v183
    %382 = vmatpush.msra.mxu0 %v182
    %383 = vmatpush.msra.mxu0 %v181
    %384 = vmatpush.msra.mxu0 %v180
    %385 = vmatpush.msra.mxu0 %v179
    %386 = vmatpush.msra.mxu0 %v178
    %387 = vmatpush.msra.mxu0 %v177
    %388 = vmatpush.msra.mxu0 %v176
    %389 = vmatpush.msra.mxu0 %v175
    %390 = vmatpush.msra.mxu0 %v174
    %391 = vmatmul.f32.gmra.mxu0 %v234
    %v392 = vpop.f32.mrf.mxu0
    %v393 = vadd.f32 %v373, %v392
    %394 = vdwg.mxu0
    %395 = vmax.xlane.f32.xlu0 %v393
    %v396 = vpop.xlane.xlu0 %395
    %v397 = vsub.f32 %v393, %v396
    %v398 = vmul.f32 %v397, 1.442695
    %v399 = vpow.pop %v398
    %400 = vadd.xlane.f32.xlu0 %v399
    %v401 = vpop.xlane.xlu0 %400
    %v402 = vrcp.pop %v401
    %v403 = vmul.f32 %v399, %v402
    %v404 = vsub.f32 %v403, %v190
    %405 = vmatpush.xpose.msra.mxu0 %v77
    %406 = vmatpush.xpose.msra.mxu0 %v76
    %407 = vmatpush.xpose.msra.mxu0 %v75
    %408 = vmatpush.xpose.msra.mxu0 %v74
    %409 = vmatpush.xpose.msra.mxu0 %v73
    %410 = vmatpush.xpose.msra.mxu0 %v72
    %411 = vmatpush.xpose.msra.mxu0 %v71
    %412 = vmatpush.xpose.msra.mxu0 %v70
    %413 = vmatpush.xpose.msra.mxu0 %v69
    %414 = vmatpush.xpose.msra.mxu0 %v68
    %415 = vmatpush.xpose.msra.mxu0 %v67
    %416 = vmatpush.xpose.msra.mxu0 %v66
    %417 = vmatpush.xpose.msra.mxu0 %v65
    %418 = vmatpush.xpose.msra.mxu0 %v64
    %419 = vmatpush.xpose.msra.mxu0 %v63
    %420 = vmatpush.xpose.msra.mxu0 %v62
    %421 = vmatmul.f32.gmra.mxu0 %v404
    %v422 = vpop.f32.mrf.mxu0
    %v423 = vadd.f32 0.0, %v422
    %424 = vdwg.mxu0
    %425 = vmatpush.xpose.msra.mxu0 %v93
    %426 = vmatpush.xpose.msra.mxu0 %v92
    %427 = vmatpush.xpose.msra.mxu0 %v91
    %428 = vmatpush.xpose.msra.mxu0 %v90
    %429 = vmatpush.xpose.msra.mxu0 %v89
    %430 = vmatpush.xpose.msra.mxu0 %v88
    %431 = vmatpush.xpose.msra.mxu0 %v87
    %432 = vmatpush.xpose.msra.mxu0 %v86
    %433 = vmatpush.xpose.msra.mxu0 %v85
    %434 = vmatpush.xpose.msra.mxu0 %v84
    %435 = vmatpush.xpose.msra.mxu0 %v83
    %436 = vmatpush.xpose.msra.mxu0 %v82
    %437 = vmatpush.xpose.msra.mxu0 %v81
    %438 = vmatpush.xpose.msra.mxu0 %v80
    %439 = vmatpush.xpose.msra.mxu0 %v79
    %440 = vmatpush.xpose.msra.mxu0 %v78
    %441 = vmatmul.f32.gmra.mxu0 %v404
    %v442 = vpop.f32.mrf.mxu0
    %v443 = vadd.f32 0.0, %v442
    %444 = vdwg.mxu0
    %445 = vmatpush.xpose.msra.mxu0 %v109
    %446 = vmatpush.xpose.msra.mxu0 %v108
    %447 = vmatpush.xpose.msra.mxu0 %v107
    %448 = vmatpush.xpose.msra.mxu0 %v106
    %449 = vmatpush.xpose.msra.mxu0 %v105
    %450 = vmatpush.xpose.msra.mxu0 %v104
    %451 = vmatpush.xpose.msra.mxu0 %v103
    %452 = vmatpush.xpose.msra.mxu0 %v102
    %453 = vmatpush.xpose.msra.mxu0 %v101
    %454 = vmatpush.xpose.msra.mxu0 %v100
    %455 = vmatpush.xpose.msra.mxu0 %v99
    %456 = vmatpush.xpose.msra.mxu0 %v98
    %457 = vmatpush.xpose.msra.mxu0 %v97
    %458 = vmatpush.xpose.msra.mxu0 %v96
    %459 = vmatpush.xpose.msra.mxu0 %v95
    %460 = vmatpush.xpose.msra.mxu0 %v94
    %461 = vmatmul.f32.gmra.mxu0 %v404
    %v462 = vpop.f32.mrf.mxu0
    %v463 = vadd.f32 0.0, %v462
    %464 = vdwg.mxu0
    %465 = vmatpush.xpose.msra.mxu0 %v125
    %466 = vmatpush.xpose.msra.mxu0 %v124
    %467 = vmatpush.xpose.msra.mxu0 %v123
    %468 = vmatpush.xpose.msra.mxu0 %v122
    %469 = vmatpush.xpose.msra.mxu0 %v121
    %470 = vmatpush.xpose.msra.mxu0 %v120
    %471 = vmatpush.xpose.msra.mxu0 %v119
    %472 = vmatpush.xpose.msra.mxu0 %v118
    %473 = vmatpush.xpose.msra.mxu0 %v117
    %474 = vmatpush.xpose.msra.mxu0 %v116
    %475 = vmatpush.xpose.msra.mxu0 %v115
    %476 = vmatpush.xpose.msra.mxu0 %v114
    %477 = vmatpush.xpose.msra.mxu0 %v113
    %478 = vmatpush.xpose.msra.mxu0 %v112
    %479 = vmatpush.xpose.msra.mxu0 %v111
    %480 = vmatpush.xpose.msra.mxu0 %v110
    %481 = vmatmul.f32.gmra.mxu0 %v404
    %v482 = vpop.f32.mrf.mxu0
    %v483 = vadd.f32 0.0, %v482
    %484 = vdwg.mxu0
    %485 = vmatpush.xpose.msra.mxu0 %v141
    %486 = vmatpush.xpose.msra.mxu0 %v140
    %487 = vmatpush.xpose.msra.mxu0 %v139
    %488 = vmatpush.xpose.msra.mxu0 %v138
    %489 = vmatpush.xpose.msra.mxu0 %v137
    %490 = vmatpush.xpose.msra.mxu0 %v136
    %491 = vmatpush.xpose.msra.mxu0 %v135
    %492 = vmatpush.xpose.msra.mxu0 %v134
    %493 = vmatpush.xpose.msra.mxu0 %v133
    %494 = vmatpush.xpose.msra.mxu0 %v132
    %495 = vmatpush.xpose.msra.mxu0 %v131
    %496 = vmatpush.xpose.msra.mxu0 %v130
    %497 = vmatpush.xpose.msra.mxu0 %v129
    %498 = vmatpush.xpose.msra.mxu0 %v128
    %499 = vmatpush.xpose.msra.mxu0 %v127
    %500 = vmatpush.xpose.msra.mxu0 %v126
    %501 = vmatmul.f32.gmra.mxu0 %v404
    %v502 = vpop.f32.mrf.mxu0
    %v503 = vadd.f32 0.0, %v502
    %504 = vdwg.mxu0
    %505 = vmatpush.xpose.msra.mxu0 %v157
    %506 = vmatpush.xpose.msra.mxu0 %v156
    %507 = vmatpush.xpose.msra.mxu0 %v155
    %508 = vmatpush.xpose.msra.mxu0 %v154
    %509 = vmatpush.xpose.msra.mxu0 %v153
    %510 = vmatpush.xpose.msra.mxu0 %v152
    %511 = vmatpush.xpose.msra.mxu0 %v151
    %512 = vmatpush.xpose.msra.mxu0 %v150
    %513 = vmatpush.xpose.msra.mxu0 %v149
    %514 = vmatpush.xpose.msra.mxu0 %v148
    %515 = vmatpush.xpose.msra.mxu0 %v147
    %516 = vmatpush.xpose.msra.mxu0 %v146
    %517 = vmatpush.xpose.msra.mxu0 %v145
    %518 = vmatpush.xpose.msra.mxu0 %v144
    %519 = vmatpush.xpose.msra.mxu0 %v143
    %520 = vmatpush.xpose.msra.mxu0 %v142
    %521 = vmatmul.f32.gmra.mxu0 %v404
    %v522 = vpop.f32.mrf.mxu0
    %v523 = vadd.f32 0.0, %v522
    %524 = vdwg.mxu0
    %525 = vmatpush.xpose.msra.mxu0 %v173
    %526 = vmatpush.xpose.msra.mxu0 %v172
    %527 = vmatpush.xpose.msra.mxu0 %v171
    %528 = vmatpush.xpose.msra.mxu0 %v170
    %529 = vmatpush.xpose.msra.mxu0 %v169
    %530 = vmatpush.xpose.msra.mxu0 %v168
    %531 = vmatpush.xpose.msra.mxu0 %v167
    %532 = vmatpush.xpose.msra.mxu0 %v166
    %533 = vmatpush.xpose.msra.mxu0 %v165
    %534 = vmatpush.xpose.msra.mxu0 %v164
    %535 = vmatpush.xpose.msra.mxu0 %v163
    %536 = vmatpush.xpose.msra.mxu0 %v162
    %537 = vmatpush.xpose.msra.mxu0 %v161
    %538 = vmatpush.xpose.msra.mxu0 %v160
    %539 = vmatpush.xpose.msra.mxu0 %v159
    %540 = vmatpush.xpose.msra.mxu0 %v158
    %541 = vmatmul.f32.gmra.mxu0 %v404
    %v542 = vpop.f32.mrf.mxu0
    %v543 = vadd.f32 0.0, %v542
    %544 = vdwg.mxu0
    %545 = vmatpush.xpose.msra.mxu0 %v189
    %546 = vmatpush.xpose.msra.mxu0 %v188
    %547 = vmatpush.xpose.msra.mxu0 %v187
    %548 = vmatpush.xpose.msra.mxu0 %v186
    %549 = vmatpush.xpose.msra.mxu0 %v185
    %550 = vmatpush.xpose.msra.mxu0 %v184
    %551 = vmatpush.xpose.msra.mxu0 %v183
    %552 = vmatpush.xpose.msra.mxu0 %v182
    %553 = vmatpush.xpose.msra.mxu0 %v181
    %554 = vmatpush.xpose.msra.mxu0 %v180
    %555 = vmatpush.xpose.msra.mxu0 %v179
    %556 = vmatpush.xpose.msra.mxu0 %v178
    %557 = vmatpush.xpose.msra.mxu0 %v177
    %558 = vmatpush.xpose.msra.mxu0 %v176
    %559 = vmatpush.xpose.msra.mxu0 %v175
    %560 = vmatpush.xpose.msra.mxu0 %v174
    %561 = vmatmul.f32.gmra.mxu0 %v404
    %v562 = vpop.f32.mrf.mxu0
    %v563 = vadd.f32 0.0, %v562
    %564 = vdwg.mxu0
    %vm565 = vcmp.gt.f32.partialorder %v423, 0.0
    %vm566 = vcmp.gt.f32.partialorder %v443, 0.0
    %vm567 = vcmp.gt.f32.partialorder %v463, 0.0
    %vm568 = vcmp.gt.f32.partialorder %v483, 0.0
    %vm569 = vcmp.gt.f32.partialorder %v503, 0.0
    %vm570 = vcmp.gt.f32.partialorder %v523, 0.0
    %vm571 = vcmp.gt.f32.partialorder %v543, 0.0
    %vm572 = vcmp.gt.f32.partialorder %v563, 0.0
    %vm573 = vcmp.lt.f32.partialorder %v423, 0.0
    %vm574 = vcmp.lt.f32.partialorder %v443, 0.0
    %vm575 = vcmp.lt.f32.partialorder %v463, 0.0
    %vm576 = vcmp.lt.f32.partialorder %v483, 0.0
    %vm577 = vcmp.lt.f32.partialorder %v503, 0.0
    %vm578 = vcmp.lt.f32.partialorder %v523, 0.0
    %vm579 = vcmp.lt.f32.partialorder %v543, 0.0
    %vm580 = vcmp.lt.f32.partialorder %v563, 0.0
    %v581 = vsel %vm573, -0.007843138, 0.0
    %v582 = vsel %vm574, -0.007843138, 0.0
    %v583 = vsel %vm575, -0.007843138, 0.0
    %v584 = vsel %vm576, -0.007843138, 0.0
    %v585 = vsel %vm577, -0.007843138, 0.0
    %v586 = vsel %vm578, -0.007843138, 0.0
    %v587 = vsel %vm579, -0.007843138, 0.0
    %v588 = vsel %vm580, -0.007843138, 0.0
    %v589 = vsel %vm565, 0.007843138, %v581
    %v590 = vsel %vm566, 0.007843138, %v582
    %v591 = vsel %vm567, 0.007843138, %v583
    %v592 = vsel %vm568, 0.007843138, %v584
    %v593 = vsel %vm569, 0.007843138, %v585
    %v594 = vsel %vm570, 0.007843138, %v586
    %v595 = vsel %vm571, 0.007843138, %v587
    %v596 = vsel %vm572, 0.007843138, %v588
    %v597 = vadd.f32 %v227, %v589
    %v598 = vadd.f32 %v228, %v590
    %v599 = vadd.f32 %v229, %v591
    %v600 = vadd.f32 %v230, %v592
    %v601 = vadd.f32 %v231, %v593
    %v602 = vadd.f32 %v232, %v594
    %v603 = vadd.f32 %v233, %v595
    %v604 = vadd.f32 %v234, %v596
    %v605 = vmax.f32 %v597, %v203
    %v606 = vmax.f32 %v598, %v204
    %v607 = vmax.f32 %v599, %v205
    %v608 = vmax.f32 %v600, %v206
    %v609 = vmax.f32 %v601, %v207
    %v610 = vmax.f32 %v602, %v208
    %v611 = vmax.f32 %v603, %v209
    %v612 = vmax.f32 %v604, %v210
    %v613 = vmin.f32 %v605, %v219
    %v614 = vmin.f32 %v606, %v220
    %v615 = vmin.f32 %v607, %v221
    %v616 = vmin.f32 %v608, %v222
    %v617 = vmin.f32 %v609, %v223
    %v618 = vmin.f32 %v610, %v224
    %v619 = vmin.f32 %v611, %v225
    %v620 = vmin.f32 %v612, %v226
    %621 = vmatpush.msra.mxu0 %v77
    %622 = vmatpush.msra.mxu0 %v76
    %623 = vmatpush.msra.mxu0 %v75
    %624 = vmatpush.msra.mxu0 %v74
    %625 = vmatpush.msra.mxu0 %v73
    %626 = vmatpush.msra.mxu0 %v72
    %627 = vmatpush.msra.mxu0 %v71
    %628 = vmatpush.msra.mxu0 %v70
    %629 = vmatpush.msra.mxu0 %v69
    %630 = vmatpush.msra.mxu0 %v68
    %631 = vmatpush.msra.mxu0 %v67
    %632 = vmatpush.msra.mxu0 %v66
    %633 = vmatpush.msra.mxu0 %v65
    %634 = vmatpush.msra.mxu0 %v64
    %635 = vmatpush.msra.mxu0 %v63
    %636 = vmatpush.msra.mxu0 %v62
    %637 = vmatmul.f32.gmra.mxu0 %v613
    %v638 = vpop.f32.mrf.mxu0
    %v639 = vadd.f32 %v193, %v638
    %640 = vdwg.mxu0
    %641 = vmatpush.msra.mxu0 %v93
    %642 = vmatpush.msra.mxu0 %v92
    %643 = vmatpush.msra.mxu0 %v91
    %644 = vmatpush.msra.mxu0 %v90
    %645 = vmatpush.msra.mxu0 %v89
    %646 = vmatpush.msra.mxu0 %v88
    %647 = vmatpush.msra.mxu0 %v87
    %648 = vmatpush.msra.mxu0 %v86
    %649 = vmatpush.msra.mxu0 %v85
    %650 = vmatpush.msra.mxu0 %v84
    %651 = vmatpush.msra.mxu0 %v83
    %652 = vmatpush.msra.mxu0 %v82
    %653 = vmatpush.msra.mxu0 %v81
    %654 = vmatpush.msra.mxu0 %v80
    %655 = vmatpush.msra.mxu0 %v79
    %656 = vmatpush.msra.mxu0 %v78
    %657 = vmatmul.f32.gmra.mxu0 %v614
    %v658 = vpop.f32.mrf.mxu0
    %v659 = vadd.f32 %v639, %v658
    %660 = vdwg.mxu0
    %661 = vmatpush.msra.mxu0 %v109
    %662 = vmatpush.msra.mxu0 %v108
    %663 = vmatpush.msra.mxu0 %v107
    %664 = vmatpush.msra.mxu0 %v106
    %665 = vmatpush.msra.mxu0 %v105
    %666 = vmatpush.msra.mxu0 %v104
    %667 = vmatpush.msra.mxu0 %v103
    %668 = vmatpush.msra.mxu0 %v102
    %669 = vmatpush.msra.mxu0 %v101
    %670 = vmatpush.msra.mxu0 %v100
    %671 = vmatpush.msra.mxu0 %v99
    %672 = vmatpush.msra.mxu0 %v98
    %673 = vmatpush.msra.mxu0 %v97
    %674 = vmatpush.msra.mxu0 %v96
    %675 = vmatpush.msra.mxu0 %v95
    %676 = vmatpush.msra.mxu0 %v94
    %677 = vmatmul.f32.gmra.mxu0 %v615
    %v678 = vpop.f32.mrf.mxu0
    %v679 = vadd.f32 %v659, %v678
    %680 = vdwg.mxu0
    %681 = vmatpush.msra.mxu0 %v125
    %682 = vmatpush.msra.mxu0 %v124
    %683 = vmatpush.msra.mxu0 %v123
    %684 = vmatpush.msra.mxu0 %v122
    %685 = vmatpush.msra.mxu0 %v121
    %686 = vmatpush.msra.mxu0 %v120
    %687 = vmatpush.msra.mxu0 %v119
    %688 = vmatpush.msra.mxu0 %v118
    %689 = vmatpush.msra.mxu0 %v117
    %690 = vmatpush.msra.mxu0 %v116
    %691 = vmatpush.msra.mxu0 %v115
    %692 = vmatpush.msra.mxu0 %v114
    %693 = vmatpush.msra.mxu0 %v113
    %694 = vmatpush.msra.mxu0 %v112
    %695 = vmatpush.msra.mxu0 %v111
    %696 = vmatpush.msra.mxu0 %v110
    %697 = vmatmul.f32.gmra.mxu0 %v616
    %v698 = vpop.f32.mrf.mxu0
    %v699 = vadd.f32 %v679, %v698
    %700 = vdwg.mxu0
    %701 = vmatpush.msra.mxu0 %v141
    %702 = vmatpush.msra.mxu0 %v140
    %703 = vmatpush.msra.mxu0 %v139
    %704 = vmatpush.msra.mxu0 %v138
    %705 = vmatpush.msra.mxu0 %v137
    %706 = vmatpush.msra.mxu0 %v136
    %707 = vmatpush.msra.mxu0 %v135
    %708 = vmatpush.msra.mxu0 %v134
    %709 = vmatpush.msra.mxu0 %v133
    %710 = vmatpush.msra.mxu0 %v132
    %711 = vmatpush.msra.mxu0 %v131
    %712 = vmatpush.msra.mxu0 %v130
    %713 = vmatpush.msra.mxu0 %v129
    %714 = vmatpush.msra.mxu0 %v128
    %715 = vmatpush.msra.mxu0 %v127
    %716 = vmatpush.msra.mxu0 %v126
    %717 = vmatmul.f32.gmra.mxu0 %v617
    %v718 = vpop.f32.mrf.mxu0
    %v719 = vadd.f32 %v699, %v718
    %720 = vdwg.mxu0
    %721 = vmatpush.msra.mxu0 %v157
    %722 = vmatpush.msra.mxu0 %v156
    %723 = vmatpush.msra.mxu0 %v155
    %724 = vmatpush.msra.mxu0 %v154
    %725 = vmatpush.msra.mxu0 %v153
    %726 = vmatpush.msra.mxu0 %v152
    %727 = vmatpush.msra.mxu0 %v151
    %728 = vmatpush.msra.mxu0 %v150
    %729 = vmatpush.msra.mxu0 %v149
    %730 = vmatpush.msra.mxu0 %v148
    %731 = vmatpush.msra.mxu0 %v147
    %732 = vmatpush.msra.mxu0 %v146
    %733 = vmatpush.msra.mxu0 %v145
    %734 = vmatpush.msra.mxu0 %v144
    %735 = vmatpush.msra.mxu0 %v143
    %736 = vmatpush.msra.mxu0 %v142
    %737 = vmatmul.f32.gmra.mxu0 %v618
    %v738 = vpop.f32.mrf.mxu0
    %v739 = vadd.f32 %v719, %v738
    %740 = vdwg.mxu0
    %741 = vmatpush.msra.mxu0 %v173
    %742 = vmatpush.msra.mxu0 %v172
    %743 = vmatpush.msra.mxu0 %v171
    %744 = vmatpush.msra.mxu0 %v170
    %745 = vmatpush.msra.mxu0 %v169
    %746 = vmatpush.msra.mxu0 %v168
    %747 = vmatpush.msra.mxu0 %v167
    %748 = vmatpush.msra.mxu0 %v166
    %749 = vmatpush.msra.mxu0 %v165
    %750 = vmatpush.msra.mxu0 %v164
    %751 = vmatpush.msra.mxu0 %v163
    %752 = vmatpush.msra.mxu0 %v162
    %753 = vmatpush.msra.mxu0 %v161
    %754 = vmatpush.msra.mxu0 %v160
    %755 = vmatpush.msra.mxu0 %v159
    %756 = vmatpush.msra.mxu0 %v158
    %757 = vmatmul.f32.gmra.mxu0 %v619
    %v758 = vpop.f32.mrf.mxu0
    %v759 = vadd.f32 %v739, %v758
    %760 = vdwg.mxu0
    %761 = vmatpush.msra.mxu0 %v189
    %762 = vmatpush.msra.mxu0 %v188
    %763 = vmatpush.msra.mxu0 %v187
    %764 = vmatpush.msra.mxu0 %v186
    %765 = vmatpush.msra.mxu0 %v185
    %766 = vmatpush.msra.mxu0 %v184
    %767 = vmatpush.msra.mxu0 %v183
    %768 = vmatpush.msra.mxu0 %v182
    %769 = vmatpush.msra.mxu0 %v181
    %770 = vmatpush.msra.mxu0 %v180
    %771 = vmatpush.msra.mxu0 %v179
    %772 = vmatpush.msra.mxu0 %v178
    %773 = vmatpush.msra.mxu0 %v177
    %774 = vmatpush.msra.mxu0 %v176
    %775 = vmatpush.msra.mxu0 %v175
    %776 = vmatpush.msra.mxu0 %v174
    %777 = vmatmul.f32.gmra.mxu0 %v620
    %v778 = vpop.f32.mrf.mxu0
    %v779 = vadd.f32 %v759, %v778
    %780 = vdwg.mxu0
    %781 = vmax.xlane.f32.xlu0 %v779
    %v782 = vpop.xlane.xlu0 %781
    %v783 = vsub.f32 %v779, %v782
    %v784 = vmul.f32 %v783, 1.442695
    %v785 = vpow.pop %v784
    %786 = vadd.xlane.f32.xlu0 %v785
    %v787 = vpop.xlane.xlu0 %786
    %v788 = vrcp.pop %v787
    %v789 = vmul.f32 %v785, %v788
    %v790 = vsub.f32 %v789, %v190
    %791 = vmatpush.xpose.msra.mxu0 %v77
    %792 = vmatpush.xpose.msra.mxu0 %v76
    %793 = vmatpush.xpose.msra.mxu0 %v75
    %794 = vmatpush.xpose.msra.mxu0 %v74
    %795 = vmatpush.xpose.msra.mxu0 %v73
    %796 = vmatpush.xpose.msra.mxu0 %v72
    %797 = vmatpush.xpose.msra.mxu0 %v71
    %798 = vmatpush.xpose.msra.mxu0 %v70
    %799 = vmatpush.xpose.msra.mxu0 %v69
    %800 = vmatpush.xpose.msra.mxu0 %v68
    %801 = vmatpush.xpose.msra.mxu0 %v67
    %802 = vmatpush.xpose.msra.mxu0 %v66
    %803 = vmatpush.xpose.msra.mxu0 %v65
    %804 = vmatpush.xpose.msra.mxu0 %v64
    %805 = vmatpush.xpose.msra.mxu0 %v63
    %806 = vmatpush.xpose.msra.mxu0 %v62
    %807 = vmatmul.f32.gmra.mxu0 %v790
    %v808 = vpop.f32.mrf.mxu0
    %v809 = vadd.f32 0.0, %v808
    %810 = vdwg.mxu0
    %811 = vmatpush.xpose.msra.mxu0 %v93
    %812 = vmatpush.xpose.msra.mxu0 %v92
    %813 = vmatpush.xpose.msra.mxu0 %v91
    %814 = vmatpush.xpose.msra.mxu0 %v90
    %815 = vmatpush.xpose.msra.mxu0 %v89
    %816 = vmatpush.xpose.msra.mxu0 %v88
    %817 = vmatpush.xpose.msra.mxu0 %v87
    %818 = vmatpush.xpose.msra.mxu0 %v86
    %819 = vmatpush.xpose.msra.mxu0 %v85
    %820 = vmatpush.xpose.msra.mxu0 %v84
    %821 = vmatpush.xpose.msra.mxu0 %v83
    %822 = vmatpush.xpose.msra.mxu0 %v82
    %823 = vmatpush.xpose.msra.mxu0 %v81
    %824 = vmatpush.xpose.msra.mxu0 %v80
    %825 = vmatpush.xpose.msra.mxu0 %v79
    %826 = vmatpush.xpose.msra.mxu0 %v78
    %827 = vmatmul.f32.gmra.mxu0 %v790
    %v828 = vpop.f32.mrf.mxu0
    %v829 = vadd.f32 0.0, %v828
    %830 = vdwg.mxu0
    %831 = vmatpush.xpose.msra.mxu0 %v109
    %832 = vmatpush.xpose.msra.mxu0 %v108
    %833 = vmatpush.xpose.msra.mxu0 %v107
    %834 = vmatpush.xpose.msra.mxu0 %v106
    %835 = vmatpush.xpose.msra.mxu0 %v105
    %836 = vmatpush.xpose.msra.mxu0 %v104
    %837 = vmatpush.xpose.msra.mxu0 %v103
    %838 = vmatpush.xpose.msra.mxu0 %v102
    %839 = vmatpush.xpose.msra.mxu0 %v101
    %840 = vmatpush.xpose.msra.mxu0 %v100
    %841 = vmatpush.xpose.msra.mxu0 %v99
    %842 = vmatpush.xpose.msra.mxu0 %v98
    %843 = vmatpush.xpose.msra.mxu0 %v97
    %844 = vmatpush.xpose.msra.mxu0 %v96
    %845 = vmatpush.xpose.msra.mxu0 %v95
    %846 = vmatpush.xpose.msra.mxu0 %v94
    %847 = vmatmul.f32.gmra.mxu0 %v790
    %v848 = vpop.f32.mrf.mxu0
    %v849 = vadd.f32 0.0, %v848
    %850 = vdwg.mxu0
    %851 = vmatpush.xpose.msra.mxu0 %v125
    %852 = vmatpush.xpose.msra.mxu0 %v124
    %853 = vmatpush.xpose.msra.mxu0 %v123
    %854 = vmatpush.xpose.msra.mxu0 %v122
    %855 = vmatpush.xpose.msra.mxu0 %v121
    %856 = vmatpush.xpose.msra.mxu0 %v120
    %857 = vmatpush.xpose.msra.mxu0 %v119
    %858 = vmatpush.xpose.msra.mxu0 %v118
    %859 = vmatpush.xpose.msra.mxu0 %v117
    %860 = vmatpush.xpose.msra.mxu0 %v116
    %861 = vmatpush.xpose.msra.mxu0 %v115
    %862 = vmatpush.xpose.msra.mxu0 %v114
    %863 = vmatpush.xpose.msra.mxu0 %v113
    %864 = vmatpush.xpose.msra.mxu0 %v112
    %865 = vmatpush.xpose.msra.mxu0 %v111
    %866 = vmatpush.xpose.msra.mxu0 %v110
    %867 = vmatmul.f32.gmra.mxu0 %v790
    %v868 = vpop.f32.mrf.mxu0
    %v869 = vadd.f32 0.0, %v868
    %870 = vdwg.mxu0
    %871 = vmatpush.xpose.msra.mxu0 %v141
    %872 = vmatpush.xpose.msra.mxu0 %v140
    %873 = vmatpush.xpose.msra.mxu0 %v139
    %874 = vmatpush.xpose.msra.mxu0 %v138
    %875 = vmatpush.xpose.msra.mxu0 %v137
    %876 = vmatpush.xpose.msra.mxu0 %v136
    %877 = vmatpush.xpose.msra.mxu0 %v135
    %878 = vmatpush.xpose.msra.mxu0 %v134
    %879 = vmatpush.xpose.msra.mxu0 %v133
    %880 = vmatpush.xpose.msra.mxu0 %v132
    %881 = vmatpush.xpose.msra.mxu0 %v131
    %882 = vmatpush.xpose.msra.mxu0 %v130
    %883 = vmatpush.xpose.msra.mxu0 %v129
    %884 = vmatpush.xpose.msra.mxu0 %v128
    %885 = vmatpush.xpose.msra.mxu0 %v127
    %886 = vmatpush.xpose.msra.mxu0 %v126
    %887 = vmatmul.f32.gmra.mxu0 %v790
    %v888 = vpop.f32.mrf.mxu0
    %v889 = vadd.f32 0.0, %v888
    %890 = vdwg.mxu0
    %891 = vmatpush.xpose.msra.mxu0 %v157
    %892 = vmatpush.xpose.msra.mxu0 %v156
    %893 = vmatpush.xpose.msra.mxu0 %v155
    %894 = vmatpush.xpose.msra.mxu0 %v154
    %895 = vmatpush.xpose.msra.mxu0 %v153
    %896 = vmatpush.xpose.msra.mxu0 %v152
    %897 = vmatpush.xpose.msra.mxu0 %v151
    %898 = vmatpush.xpose.msra.mxu0 %v150
    %899 = vmatpush.xpose.msra.mxu0 %v149
    %900 = vmatpush.xpose.msra.mxu0 %v148
    %901 = vmatpush.xpose.msra.mxu0 %v147
    %902 = vmatpush.xpose.msra.mxu0 %v146
    %903 = vmatpush.xpose.msra.mxu0 %v145
    %904 = vmatpush.xpose.msra.mxu0 %v144
    %905 = vmatpush.xpose.msra.mxu0 %v143
    %906 = vmatpush.xpose.msra.mxu0 %v142
    %907 = vmatmul.f32.gmra.mxu0 %v790
    %v908 = vpop.f32.mrf.mxu0
    %v909 = vadd.f32 0.0, %v908
    %910 = vdwg.mxu0
    %911 = vmatpush.xpose.msra.mxu0 %v173
    %912 = vmatpush.xpose.msra.mxu0 %v172
    %913 = vmatpush.xpose.msra.mxu0 %v171
    %914 = vmatpush.xpose.msra.mxu0 %v170
    %915 = vmatpush.xpose.msra.mxu0 %v169
    %916 = vmatpush.xpose.msra.mxu0 %v168
    %917 = vmatpush.xpose.msra.mxu0 %v167
    %918 = vmatpush.xpose.msra.mxu0 %v166
    %919 = vmatpush.xpose.msra.mxu0 %v165
    %920 = vmatpush.xpose.msra.mxu0 %v164
    %921 = vmatpush.xpose.msra.mxu0 %v163
    %922 = vmatpush.xpose.msra.mxu0 %v162
    %923 = vmatpush.xpose.msra.mxu0 %v161
    %924 = vmatpush.xpose.msra.mxu0 %v160
    %925 = vmatpush.xpose.msra.mxu0 %v159
    %926 = vmatpush.xpose.msra.mxu0 %v158
    %927 = vmatmul.f32.gmra.mxu0 %v790
    %v928 = vpop.f32.mrf.mxu0
    %v929 = vadd.f32 0.0, %v928
    %930 = vdwg.mxu0
    %931 = vmatpush.xpose.msra.mxu0 %v189
    %932 = vmatpush.xpose.msra.mxu0 %v188
    %933 = vmatpush.xpose.msra.mxu0 %v187
    %934 = vmatpush.xpose.msra.mxu0 %v186
    %935 = vmatpush.xpose.msra.mxu0 %v185
    %936 = vmatpush.xpose.msra.mxu0 %v184
    %937 = vmatpush.xpose.msra.mxu0 %v183
    %938 = vmatpush.xpose.msra.mxu0 %v182
    %939 = vmatpush.xpose.msra.mxu0 %v181
    %940 = vmatpush.xpose.msra.mxu0 %v180
    %941 = vmatpush.xpose.msra.mxu0 %v179
    %942 = vmatpush.xpose.msra.mxu0 %v178
    %943 = vmatpush.xpose.msra.mxu0 %v177
    %944 = vmatpush.xpose.msra.mxu0 %v176
    %945 = vmatpush.xpose.msra.mxu0 %v175
    %946 = vmatpush.xpose.msra.mxu0 %v174
    %947 = vmatmul.f32.gmra.mxu0 %v790
    %v948 = vpop.f32.mrf.mxu0
    %v949 = vadd.f32 0.0, %v948
    %950 = vdwg.mxu0
    %vm951 = vcmp.gt.f32.partialorder %v809, 0.0
    %vm952 = vcmp.gt.f32.partialorder %v829, 0.0
    %vm953 = vcmp.gt.f32.partialorder %v849, 0.0
    %vm954 = vcmp.gt.f32.partialorder %v869, 0.0
    %vm955 = vcmp.gt.f32.partialorder %v889, 0.0
    %vm956 = vcmp.gt.f32.partialorder %v909, 0.0
    %vm957 = vcmp.gt.f32.partialorder %v929, 0.0
    %vm958 = vcmp.gt.f32.partialorder %v949, 0.0
    %vm959 = vcmp.lt.f32.partialorder %v809, 0.0
    %vm960 = vcmp.lt.f32.partialorder %v829, 0.0
    %vm961 = vcmp.lt.f32.partialorder %v849, 0.0
    %vm962 = vcmp.lt.f32.partialorder %v869, 0.0
    %vm963 = vcmp.lt.f32.partialorder %v889, 0.0
    %vm964 = vcmp.lt.f32.partialorder %v909, 0.0
    %vm965 = vcmp.lt.f32.partialorder %v929, 0.0
    %vm966 = vcmp.lt.f32.partialorder %v949, 0.0
    %v967 = vsel %vm959, -0.007843138, 0.0
    %v968 = vsel %vm960, -0.007843138, 0.0
    %v969 = vsel %vm961, -0.007843138, 0.0
    %v970 = vsel %vm962, -0.007843138, 0.0
    %v971 = vsel %vm963, -0.007843138, 0.0
    %v972 = vsel %vm964, -0.007843138, 0.0
    %v973 = vsel %vm965, -0.007843138, 0.0
    %v974 = vsel %vm966, -0.007843138, 0.0
    %v975 = vsel %vm951, 0.007843138, %v967
    %v976 = vsel %vm952, 0.007843138, %v968
    %v977 = vsel %vm953, 0.007843138, %v969
    %v978 = vsel %vm954, 0.007843138, %v970
    %v979 = vsel %vm955, 0.007843138, %v971
    %v980 = vsel %vm956, 0.007843138, %v972
    %v981 = vsel %vm957, 0.007843138, %v973
    %v982 = vsel %vm958, 0.007843138, %v974
    %v983 = vadd.f32 %v613, %v975
    %v984 = vadd.f32 %v614, %v976
    %v985 = vadd.f32 %v615, %v977
    %v986 = vadd.f32 %v616, %v978
    %v987 = vadd.f32 %v617, %v979
    %v988 = vadd.f32 %v618, %v980
    %v989 = vadd.f32 %v619, %v981
    %v990 = vadd.f32 %v620, %v982
    %v991 = vmax.f32 %v983, %v203
    %v992 = vmax.f32 %v984, %v204
    %v993 = vmax.f32 %v985, %v205
    %v994 = vmax.f32 %v986, %v206
    %v995 = vmax.f32 %v987, %v207
    %v996 = vmax.f32 %v988, %v208
    %v997 = vmax.f32 %v989, %v209
    %v998 = vmax.f32 %v990, %v210
    %v999 = vmin.f32 %v991, %v219
    %v1000 = vmin.f32 %v992, %v220
    %v1001 = vmin.f32 %v993, %v221
    %v1002 = vmin.f32 %v994, %v222
    %v1003 = vmin.f32 %v995, %v223
    %v1004 = vmin.f32 %v996, %v224
    %v1005 = vmin.f32 %v997, %v225
    %v1006 = vmin.f32 %v998, %v226
    %1007 = vmatpush.msra.mxu0 %v77
    %1008 = vmatpush.msra.mxu0 %v76
    %1009 = vmatpush.msra.mxu0 %v75
    %1010 = vmatpush.msra.mxu0 %v74
    %1011 = vmatpush.msra.mxu0 %v73
    %1012 = vmatpush.msra.mxu0 %v72
    %1013 = vmatpush.msra.mxu0 %v71
    %1014 = vmatpush.msra.mxu0 %v70
    %1015 = vmatpush.msra.mxu0 %v69
    %1016 = vmatpush.msra.mxu0 %v68
    %1017 = vmatpush.msra.mxu0 %v67
    %1018 = vmatpush.msra.mxu0 %v66
    %1019 = vmatpush.msra.mxu0 %v65
    %1020 = vmatpush.msra.mxu0 %v64
    %1021 = vmatpush.msra.mxu0 %v63
    %1022 = vmatpush.msra.mxu0 %v62
    %1023 = vmatmul.f32.gmra.mxu0 %v999
    %v1024 = vpop.f32.mrf.mxu0
    %v1025 = vadd.f32 %v193, %v1024
    %1026 = vdwg.mxu0
    %1027 = vmatpush.msra.mxu0 %v93
    %1028 = vmatpush.msra.mxu0 %v92
    %1029 = vmatpush.msra.mxu0 %v91
    %1030 = vmatpush.msra.mxu0 %v90
    %1031 = vmatpush.msra.mxu0 %v89
    %1032 = vmatpush.msra.mxu0 %v88
    %1033 = vmatpush.msra.mxu0 %v87
    %1034 = vmatpush.msra.mxu0 %v86
    %1035 = vmatpush.msra.mxu0 %v85
    %1036 = vmatpush.msra.mxu0 %v84
    %1037 = vmatpush.msra.mxu0 %v83
    %1038 = vmatpush.msra.mxu0 %v82
    %1039 = vmatpush.msra.mxu0 %v81
    %1040 = vmatpush.msra.mxu0 %v80
    %1041 = vmatpush.msra.mxu0 %v79
    %1042 = vmatpush.msra.mxu0 %v78
    %1043 = vmatmul.f32.gmra.mxu0 %v1000
    %v1044 = vpop.f32.mrf.mxu0
    %v1045 = vadd.f32 %v1025, %v1044
    %1046 = vdwg.mxu0
    %1047 = vmatpush.msra.mxu0 %v109
    %1048 = vmatpush.msra.mxu0 %v108
    %1049 = vmatpush.msra.mxu0 %v107
    %1050 = vmatpush.msra.mxu0 %v106
    %1051 = vmatpush.msra.mxu0 %v105
    %1052 = vmatpush.msra.mxu0 %v104
    %1053 = vmatpush.msra.mxu0 %v103
    %1054 = vmatpush.msra.mxu0 %v102
    %1055 = vmatpush.msra.mxu0 %v101
    %1056 = vmatpush.msra.mxu0 %v100
    %1057 = vmatpush.msra.mxu0 %v99
    %1058 = vmatpush.msra.mxu0 %v98
    %1059 = vmatpush.msra.mxu0 %v97
    %1060 = vmatpush.msra.mxu0 %v96
    %1061 = vmatpush.msra.mxu0 %v95
    %1062 = vmatpush.msra.mxu0 %v94
    %1063 = vmatmul.f32.gmra.mxu0 %v1001
    %v1064 = vpop.f32.mrf.mxu0
    %v1065 = vadd.f32 %v1045, %v1064
    %1066 = vdwg.mxu0
    %1067 = vmatpush.msra.mxu0 %v125
    %1068 = vmatpush.msra.mxu0 %v124
    %1069 = vmatpush.msra.mxu0 %v123
    %1070 = vmatpush.msra.mxu0 %v122
    %1071 = vmatpush.msra.mxu0 %v121
    %1072 = vmatpush.msra.mxu0 %v120
    %1073 = vmatpush.msra.mxu0 %v119
    %1074 = vmatpush.msra.mxu0 %v118
    %1075 = vmatpush.msra.mxu0 %v117
    %1076 = vmatpush.msra.mxu0 %v116
    %1077 = vmatpush.msra.mxu0 %v115
    %1078 = vmatpush.msra.mxu0 %v114
    %1079 = vmatpush.msra.mxu0 %v113
    %1080 = vmatpush.msra.mxu0 %v112
    %1081 = vmatpush.msra.mxu0 %v111
    %1082 = vmatpush.msra.mxu0 %v110
    %1083 = vmatmul.f32.gmra.mxu0 %v1002
    %v1084 = vpop.f32.mrf.mxu0
    %v1085 = vadd.f32 %v1065, %v1084
    %1086 = vdwg.mxu0
    %1087 = vmatpush.msra.mxu0 %v141
    %1088 = vmatpush.msra.mxu0 %v140
    %1089 = vmatpush.msra.mxu0 %v139
    %1090 = vmatpush.msra.mxu0 %v138
    %1091 = vmatpush.msra.mxu0 %v137
    %1092 = vmatpush.msra.mxu0 %v136
    %1093 = vmatpush.msra.mxu0 %v135
    %1094 = vmatpush.msra.mxu0 %v134
    %1095 = vmatpush.msra.mxu0 %v133
    %1096 = vmatpush.msra.mxu0 %v132
    %1097 = vmatpush.msra.mxu0 %v131
    %1098 = vmatpush.msra.mxu0 %v130
    %1099 = vmatpush.msra.mxu0 %v129
    %1100 = vmatpush.msra.mxu0 %v128
    %1101 = vmatpush.msra.mxu0 %v127
    %1102 = vmatpush.msra.mxu0 %v126
    %1103 = vmatmul.f32.gmra.mxu0 %v1003
    %v1104 = vpop.f32.mrf.mxu0
    %v1105 = vadd.f32 %v1085, %v1104
    %1106 = vdwg.mxu0
    %1107 = vmatpush.msra.mxu0 %v157
    %1108 = vmatpush.msra.mxu0 %v156
    %1109 = vmatpush.msra.mxu0 %v155
    %1110 = vmatpush.msra.mxu0 %v154
    %1111 = vmatpush.msra.mxu0 %v153
    %1112 = vmatpush.msra.mxu0 %v152
    %1113 = vmatpush.msra.mxu0 %v151
    %1114 = vmatpush.msra.mxu0 %v150
    %1115 = vmatpush.msra.mxu0 %v149
    %1116 = vmatpush.msra.mxu0 %v148
    %1117 = vmatpush.msra.mxu0 %v147
    %1118 = vmatpush.msra.mxu0 %v146
    %1119 = vmatpush.msra.mxu0 %v145
    %1120 = vmatpush.msra.mxu0 %v144
    %1121 = vmatpush.msra.mxu0 %v143
    %1122 = vmatpush.msra.mxu0 %v142
    %1123 = vmatmul.f32.gmra.mxu0 %v1004
    %v1124 = vpop.f32.mrf.mxu0
    %v1125 = vadd.f32 %v1105, %v1124
    %1126 = vdwg.mxu0
    %1127 = vmatpush.msra.mxu0 %v173
    %1128 = vmatpush.msra.mxu0 %v172
    %1129 = vmatpush.msra.mxu0 %v171
    %1130 = vmatpush.msra.mxu0 %v170
    %1131 = vmatpush.msra.mxu0 %v169
    %1132 = vmatpush.msra.mxu0 %v168
    %1133 = vmatpush.msra.mxu0 %v167
    %1134 = vmatpush.msra.mxu0 %v166
    %1135 = vmatpush.msra.mxu0 %v165
    %1136 = vmatpush.msra.mxu0 %v164
    %1137 = vmatpush.msra.mxu0 %v163
    %1138 = vmatpush.msra.mxu0 %v162
    %1139 = vmatpush.msra.mxu0 %v161
    %1140 = vmatpush.msra.mxu0 %v160
    %1141 = vmatpush.msra.mxu0 %v159
    %1142 = vmatpush.msra.mxu0 %v158
    %1143 = vmatmul.f32.gmra.mxu0 %v1005
    %v1144 = vpop.f32.mrf.mxu0
    %v1145 = vadd.f32 %v1125, %v1144
    %1146 = vdwg.mxu0
    %1147 = vmatpush.msra.mxu0 %v189
    %1148 = vmatpush.msra.mxu0 %v188
    %1149 = vmatpush.msra.mxu0 %v187
    %1150 = vmatpush.msra.mxu0 %v186
    %1151 = vmatpush.msra.mxu0 %v185
    %1152 = vmatpush.msra.mxu0 %v184
    %1153 = vmatpush.msra.mxu0 %v183
    %1154 = vmatpush.msra.mxu0 %v182
    %1155 = vmatpush.msra.mxu0 %v181
    %1156 = vmatpush.msra.mxu0 %v180
    %1157 = vmatpush.msra.mxu0 %v179
    %1158 = vmatpush.msra.mxu0 %v178
    %1159 = vmatpush.msra.mxu0 %v177
    %1160 = vmatpush.msra.mxu0 %v176
    %1161 = vmatpush.msra.mxu0 %v175
    %1162 = vmatpush.msra.mxu0 %v174
    %1163 = vmatmul.f32.gmra.mxu0 %v1006
    %v1164 = vpop.f32.mrf.mxu0
    %v1165 = vadd.f32 %v1145, %v1164
    %1166 = vdwg.mxu0
    %1167 = vmax.xlane.f32.xlu0 %v1165
    %v1168 = vpop.xlane.xlu0 %1167
    %v1169 = vsub.f32 %v1165, %v1168
    %v1170 = vmul.f32 %v1169, 1.442695
    %v1171 = vpow.pop %v1170
    %1172 = vadd.xlane.f32.xlu0 %v1171
    %v1173 = vpop.xlane.xlu0 %1172
    %v1174 = vrcp.pop %v1173
    %v1175 = vmul.f32 %v1171, %v1174
    %v1176 = vsub.f32 %v1175, %v190
    %1177 = vmatpush.xpose.msra.mxu0 %v77
    %1178 = vmatpush.xpose.msra.mxu0 %v76
    %1179 = vmatpush.xpose.msra.mxu0 %v75
    %1180 = vmatpush.xpose.msra.mxu0 %v74
    %1181 = vmatpush.xpose.msra.mxu0 %v73
    %1182 = vmatpush.xpose.msra.mxu0 %v72
    %1183 = vmatpush.xpose.msra.mxu0 %v71
    %1184 = vmatpush.xpose.msra.mxu0 %v70
    %1185 = vmatpush.xpose.msra.mxu0 %v69
    %1186 = vmatpush.xpose.msra.mxu0 %v68
    %1187 = vmatpush.xpose.msra.mxu0 %v67
    %1188 = vmatpush.xpose.msra.mxu0 %v66
    %1189 = vmatpush.xpose.msra.mxu0 %v65
    %1190 = vmatpush.xpose.msra.mxu0 %v64
    %1191 = vmatpush.xpose.msra.mxu0 %v63
    %1192 = vmatpush.xpose.msra.mxu0 %v62
    %1193 = vmatmul.f32.gmra.mxu0 %v1176
    %v1194 = vpop.f32.mrf.mxu0
    %v1195 = vadd.f32 0.0, %v1194
    %1196 = vdwg.mxu0
    %1197 = vmatpush.xpose.msra.mxu0 %v93
    %1198 = vmatpush.xpose.msra.mxu0 %v92
    %1199 = vmatpush.xpose.msra.mxu0 %v91
    %1200 = vmatpush.xpose.msra.mxu0 %v90
    %1201 = vmatpush.xpose.msra.mxu0 %v89
    %1202 = vmatpush.xpose.msra.mxu0 %v88
    %1203 = vmatpush.xpose.msra.mxu0 %v87
    %1204 = vmatpush.xpose.msra.mxu0 %v86
    %1205 = vmatpush.xpose.msra.mxu0 %v85
    %1206 = vmatpush.xpose.msra.mxu0 %v84
    %1207 = vmatpush.xpose.msra.mxu0 %v83
    %1208 = vmatpush.xpose.msra.mxu0 %v82
    %1209 = vmatpush.xpose.msra.mxu0 %v81
    %1210 = vmatpush.xpose.msra.mxu0 %v80
    %1211 = vmatpush.xpose.msra.mxu0 %v79
    %1212 = vmatpush.xpose.msra.mxu0 %v78
    %1213 = vmatmul.f32.gmra.mxu0 %v1176
    %v1214 = vpop.f32.mrf.mxu0
    %v1215 = vadd.f32 0.0, %v1214
    %1216 = vdwg.mxu0
    %1217 = vmatpush.xpose.msra.mxu0 %v109
    %1218 = vmatpush.xpose.msra.mxu0 %v108
    %1219 = vmatpush.xpose.msra.mxu0 %v107
    %1220 = vmatpush.xpose.msra.mxu0 %v106
    %1221 = vmatpush.xpose.msra.mxu0 %v105
    %1222 = vmatpush.xpose.msra.mxu0 %v104
    %1223 = vmatpush.xpose.msra.mxu0 %v103
    %1224 = vmatpush.xpose.msra.mxu0 %v102
    %1225 = vmatpush.xpose.msra.mxu0 %v101
    %1226 = vmatpush.xpose.msra.mxu0 %v100
    %1227 = vmatpush.xpose.msra.mxu0 %v99
    %1228 = vmatpush.xpose.msra.mxu0 %v98
    %1229 = vmatpush.xpose.msra.mxu0 %v97
    %1230 = vmatpush.xpose.msra.mxu0 %v96
    %1231 = vmatpush.xpose.msra.mxu0 %v95
    %1232 = vmatpush.xpose.msra.mxu0 %v94
    %1233 = vmatmul.f32.gmra.mxu0 %v1176
    %v1234 = vpop.f32.mrf.mxu0
    %v1235 = vadd.f32 0.0, %v1234
    %1236 = vdwg.mxu0
    %1237 = vmatpush.xpose.msra.mxu0 %v125
    %1238 = vmatpush.xpose.msra.mxu0 %v124
    %1239 = vmatpush.xpose.msra.mxu0 %v123
    %1240 = vmatpush.xpose.msra.mxu0 %v122
    %1241 = vmatpush.xpose.msra.mxu0 %v121
    %1242 = vmatpush.xpose.msra.mxu0 %v120
    %1243 = vmatpush.xpose.msra.mxu0 %v119
    %1244 = vmatpush.xpose.msra.mxu0 %v118
    %1245 = vmatpush.xpose.msra.mxu0 %v117
    %1246 = vmatpush.xpose.msra.mxu0 %v116
    %1247 = vmatpush.xpose.msra.mxu0 %v115
    %1248 = vmatpush.xpose.msra.mxu0 %v114
    %1249 = vmatpush.xpose.msra.mxu0 %v113
    %1250 = vmatpush.xpose.msra.mxu0 %v112
    %1251 = vmatpush.xpose.msra.mxu0 %v111
    %1252 = vmatpush.xpose.msra.mxu0 %v110
    %1253 = vmatmul.f32.gmra.mxu0 %v1176
    %v1254 = vpop.f32.mrf.mxu0
    %v1255 = vadd.f32 0.0, %v1254
    %1256 = vdwg.mxu0
    %1257 = vmatpush.xpose.msra.mxu0 %v141
    %1258 = vmatpush.xpose.msra.mxu0 %v140
    %1259 = vmatpush.xpose.msra.mxu0 %v139
    %1260 = vmatpush.xpose.msra.mxu0 %v138
    %1261 = vmatpush.xpose.msra.mxu0 %v137
    %1262 = vmatpush.xpose.msra.mxu0 %v136
    %1263 = vmatpush.xpose.msra.mxu0 %v135
    %1264 = vmatpush.xpose.msra.mxu0 %v134
    %1265 = vmatpush.xpose.msra.mxu0 %v133
    %1266 = vmatpush.xpose.msra.mxu0 %v132
    %1267 = vmatpush.xpose.msra.mxu0 %v131
    %1268 = vmatpush.xpose.msra.mxu0 %v130
    %1269 = vmatpush.xpose.msra.mxu0 %v129
    %1270 = vmatpush.xpose.msra.mxu0 %v128
    %1271 = vmatpush.xpose.msra.mxu0 %v127
    %1272 = vmatpush.xpose.msra.mxu0 %v126
    %1273 = vmatmul.f32.gmra.mxu0 %v1176
    %v1274 = vpop.f32.mrf.mxu0
    %v1275 = vadd.f32 0.0, %v1274
    %1276 = vdwg.mxu0
    %1277 = vmatpush.xpose.msra.mxu0 %v157
    %1278 = vmatpush.xpose.msra.mxu0 %v156
    %1279 = vmatpush.xpose.msra.mxu0 %v155
    %1280 = vmatpush.xpose.msra.mxu0 %v154
    %1281 = vmatpush.xpose.msra.mxu0 %v153
    %1282 = vmatpush.xpose.msra.mxu0 %v152
    %1283 = vmatpush.xpose.msra.mxu0 %v151
    %1284 = vmatpush.xpose.msra.mxu0 %v150
    %1285 = vmatpush.xpose.msra.mxu0 %v149
    %1286 = vmatpush.xpose.msra.mxu0 %v148
    %1287 = vmatpush.xpose.msra.mxu0 %v147
    %1288 = vmatpush.xpose.msra.mxu0 %v146
    %1289 = vmatpush.xpose.msra.mxu0 %v145
    %1290 = vmatpush.xpose.msra.mxu0 %v144
    %1291 = vmatpush.xpose.msra.mxu0 %v143
    %1292 = vmatpush.xpose.msra.mxu0 %v142
    %1293 = vmatmul.f32.gmra.mxu0 %v1176
    %v1294 = vpop.f32.mrf.mxu0
    %v1295 = vadd.f32 0.0, %v1294
    %1296 = vdwg.mxu0
    %1297 = vmatpush.xpose.msra.mxu0 %v173
    %1298 = vmatpush.xpose.msra.mxu0 %v172
    %1299 = vmatpush.xpose.msra.mxu0 %v171
    %1300 = vmatpush.xpose.msra.mxu0 %v170
    %1301 = vmatpush.xpose.msra.mxu0 %v169
    %1302 = vmatpush.xpose.msra.mxu0 %v168
    %1303 = vmatpush.xpose.msra.mxu0 %v167
    %1304 = vmatpush.xpose.msra.mxu0 %v166
    %1305 = vmatpush.xpose.msra.mxu0 %v165
    %1306 = vmatpush.xpose.msra.mxu0 %v164
    %1307 = vmatpush.xpose.msra.mxu0 %v163
    %1308 = vmatpush.xpose.msra.mxu0 %v162
    %1309 = vmatpush.xpose.msra.mxu0 %v161
    %1310 = vmatpush.xpose.msra.mxu0 %v160
    %1311 = vmatpush.xpose.msra.mxu0 %v159
    %1312 = vmatpush.xpose.msra.mxu0 %v158
    %1313 = vmatmul.f32.gmra.mxu0 %v1176
    %v1314 = vpop.f32.mrf.mxu0
    %v1315 = vadd.f32 0.0, %v1314
    %1316 = vdwg.mxu0
    %1317 = vmatpush.xpose.msra.mxu0 %v189
    %1318 = vmatpush.xpose.msra.mxu0 %v188
    %1319 = vmatpush.xpose.msra.mxu0 %v187
    %1320 = vmatpush.xpose.msra.mxu0 %v186
    %1321 = vmatpush.xpose.msra.mxu0 %v185
    %1322 = vmatpush.xpose.msra.mxu0 %v184
    %1323 = vmatpush.xpose.msra.mxu0 %v183
    %1324 = vmatpush.xpose.msra.mxu0 %v182
    %1325 = vmatpush.xpose.msra.mxu0 %v181
    %1326 = vmatpush.xpose.msra.mxu0 %v180
    %1327 = vmatpush.xpose.msra.mxu0 %v179
    %1328 = vmatpush.xpose.msra.mxu0 %v178
    %1329 = vmatpush.xpose.msra.mxu0 %v177
    %1330 = vmatpush.xpose.msra.mxu0 %v176
    %1331 = vmatpush.xpose.msra.mxu0 %v175
    %1332 = vmatpush.xpose.msra.mxu0 %v174
    %1333 = vmatmul.f32.gmra.mxu0 %v1176
    %v1334 = vpop.f32.mrf.mxu0
    %v1335 = vadd.f32 0.0, %v1334
    %1336 = vdwg.mxu0
    %vm1337 = vcmp.gt.f32.partialorder %v1195, 0.0
    %vm1338 = vcmp.gt.f32.partialorder %v1215, 0.0
    %vm1339 = vcmp.gt.f32.partialorder %v1235, 0.0
    %vm1340 = vcmp.gt.f32.partialorder %v1255, 0.0
    %vm1341 = vcmp.gt.f32.partialorder %v1275, 0.0
    %vm1342 = vcmp.gt.f32.partialorder %v1295, 0.0
    %vm1343 = vcmp.gt.f32.partialorder %v1315, 0.0
    %vm1344 = vcmp.gt.f32.partialorder %v1335, 0.0
    %vm1345 = vcmp.lt.f32.partialorder %v1195, 0.0
    %vm1346 = vcmp.lt.f32.partialorder %v1215, 0.0
    %vm1347 = vcmp.lt.f32.partialorder %v1235, 0.0
    %vm1348 = vcmp.lt.f32.partialorder %v1255, 0.0
    %vm1349 = vcmp.lt.f32.partialorder %v1275, 0.0
    %vm1350 = vcmp.lt.f32.partialorder %v1295, 0.0
    %vm1351 = vcmp.lt.f32.partialorder %v1315, 0.0
    %vm1352 = vcmp.lt.f32.partialorder %v1335, 0.0
    %v1353 = vsel %vm1345, -0.007843138, 0.0
    %v1354 = vsel %vm1346, -0.007843138, 0.0
    %v1355 = vsel %vm1347, -0.007843138, 0.0
    %v1356 = vsel %vm1348, -0.007843138, 0.0
    %v1357 = vsel %vm1349, -0.007843138, 0.0
    %v1358 = vsel %vm1350, -0.007843138, 0.0
    %v1359 = vsel %vm1351, -0.007843138, 0.0
    %v1360 = vsel %vm1352, -0.007843138, 0.0
    %v1361 = vsel %vm1337, 0.007843138, %v1353
    %v1362 = vsel %vm1338, 0.007843138, %v1354
    %v1363 = vsel %vm1339, 0.007843138, %v1355
    %v1364 = vsel %vm1340, 0.007843138, %v1356
    %v1365 = vsel %vm1341, 0.007843138, %v1357
    %v1366 = vsel %vm1342, 0.007843138, %v1358
    %v1367 = vsel %vm1343, 0.007843138, %v1359
    %v1368 = vsel %vm1344, 0.007843138, %v1360
    %v1369 = vadd.f32 %v999, %v1361
    %v1370 = vadd.f32 %v1000, %v1362
    %v1371 = vadd.f32 %v1001, %v1363
    %v1372 = vadd.f32 %v1002, %v1364
    %v1373 = vadd.f32 %v1003, %v1365
    %v1374 = vadd.f32 %v1004, %v1366
    %v1375 = vadd.f32 %v1005, %v1367
    %v1376 = vadd.f32 %v1006, %v1368
    %v1377 = vmax.f32 %v1369, %v203
    %v1378 = vmax.f32 %v1370, %v204
    %v1379 = vmax.f32 %v1371, %v205
    %v1380 = vmax.f32 %v1372, %v206
    %v1381 = vmax.f32 %v1373, %v207
    %v1382 = vmax.f32 %v1374, %v208
    %v1383 = vmax.f32 %v1375, %v209
    %v1384 = vmax.f32 %v1376, %v210
    %v1385 = vmin.f32 %v1377, %v219
    %v1386 = vmin.f32 %v1378, %v220
    %v1387 = vmin.f32 %v1379, %v221
    %v1388 = vmin.f32 %v1380, %v222
    %v1389 = vmin.f32 %v1381, %v223
    %v1390 = vmin.f32 %v1382, %v224
    %v1391 = vmin.f32 %v1383, %v225
    %v1392 = vmin.f32 %v1384, %v226
    %1393 = vmatpush.msra.mxu0 %v77
    %1394 = vmatpush.msra.mxu0 %v76
    %1395 = vmatpush.msra.mxu0 %v75
    %1396 = vmatpush.msra.mxu0 %v74
    %1397 = vmatpush.msra.mxu0 %v73
    %1398 = vmatpush.msra.mxu0 %v72
    %1399 = vmatpush.msra.mxu0 %v71
    %1400 = vmatpush.msra.mxu0 %v70
    %1401 = vmatpush.msra.mxu0 %v69
    %1402 = vmatpush.msra.mxu0 %v68
    %1403 = vmatpush.msra.mxu0 %v67
    %1404 = vmatpush.msra.mxu0 %v66
    %1405 = vmatpush.msra.mxu0 %v65
    %1406 = vmatpush.msra.mxu0 %v64
    %1407 = vmatpush.msra.mxu0 %v63
    %1408 = vmatpush.msra.mxu0 %v62
    %1409 = vmatmul.f32.gmra.mxu0 %v1385
    %v1410 = vpop.f32.mrf.mxu0
    %v1411 = vadd.f32 %v193, %v1410
    %1412 = vdwg.mxu0
    %1413 = vmatpush.msra.mxu0 %v93
    %1414 = vmatpush.msra.mxu0 %v92
    %1415 = vmatpush.msra.mxu0 %v91
    %1416 = vmatpush.msra.mxu0 %v90
    %1417 = vmatpush.msra.mxu0 %v89
    %1418 = vmatpush.msra.mxu0 %v88
    %1419 = vmatpush.msra.mxu0 %v87
    %1420 = vmatpush.msra.mxu0 %v86
    %1421 = vmatpush.msra.mxu0 %v85
    %1422 = vmatpush.msra.mxu0 %v84
    %1423 = vmatpush.msra.mxu0 %v83
    %1424 = vmatpush.msra.mxu0 %v82
    %1425 = vmatpush.msra.mxu0 %v81
    %1426 = vmatpush.msra.mxu0 %v80
    %1427 = vmatpush.msra.mxu0 %v79
    %1428 = vmatpush.msra.mxu0 %v78
    %1429 = vmatmul.f32.gmra.mxu0 %v1386
    %v1430 = vpop.f32.mrf.mxu0
    %v1431 = vadd.f32 %v1411, %v1430
    %1432 = vdwg.mxu0
    %1433 = vmatpush.msra.mxu0 %v109
    %1434 = vmatpush.msra.mxu0 %v108
    %1435 = vmatpush.msra.mxu0 %v107
    %1436 = vmatpush.msra.mxu0 %v106
    %1437 = vmatpush.msra.mxu0 %v105
    %1438 = vmatpush.msra.mxu0 %v104
    %1439 = vmatpush.msra.mxu0 %v103
    %1440 = vmatpush.msra.mxu0 %v102
    %1441 = vmatpush.msra.mxu0 %v101
    %1442 = vmatpush.msra.mxu0 %v100
    %1443 = vmatpush.msra.mxu0 %v99
    %1444 = vmatpush.msra.mxu0 %v98
    %1445 = vmatpush.msra.mxu0 %v97
    %1446 = vmatpush.msra.mxu0 %v96
    %1447 = vmatpush.msra.mxu0 %v95
    %1448 = vmatpush.msra.mxu0 %v94
    %1449 = vmatmul.f32.gmra.mxu0 %v1387
    %v1450 = vpop.f32.mrf.mxu0
    %v1451 = vadd.f32 %v1431, %v1450
    %1452 = vdwg.mxu0
    %1453 = vmatpush.msra.mxu0 %v125
    %1454 = vmatpush.msra.mxu0 %v124
    %1455 = vmatpush.msra.mxu0 %v123
    %1456 = vmatpush.msra.mxu0 %v122
    %1457 = vmatpush.msra.mxu0 %v121
    %1458 = vmatpush.msra.mxu0 %v120
    %1459 = vmatpush.msra.mxu0 %v119
    %1460 = vmatpush.msra.mxu0 %v118
    %1461 = vmatpush.msra.mxu0 %v117
    %1462 = vmatpush.msra.mxu0 %v116
    %1463 = vmatpush.msra.mxu0 %v115
    %1464 = vmatpush.msra.mxu0 %v114
    %1465 = vmatpush.msra.mxu0 %v113
    %1466 = vmatpush.msra.mxu0 %v112
    %1467 = vmatpush.msra.mxu0 %v111
    %1468 = vmatpush.msra.mxu0 %v110
    %1469 = vmatmul.f32.gmra.mxu0 %v1388
    %v1470 = vpop.f32.mrf.mxu0
    %v1471 = vadd.f32 %v1451, %v1470
    %1472 = vdwg.mxu0
    %1473 = vmatpush.msra.mxu0 %v141
    %1474 = vmatpush.msra.mxu0 %v140
    %1475 = vmatpush.msra.mxu0 %v139
    %1476 = vmatpush.msra.mxu0 %v138
    %1477 = vmatpush.msra.mxu0 %v137
    %1478 = vmatpush.msra.mxu0 %v136
    %1479 = vmatpush.msra.mxu0 %v135
    %1480 = vmatpush.msra.mxu0 %v134
    %1481 = vmatpush.msra.mxu0 %v133
    %1482 = vmatpush.msra.mxu0 %v132
    %1483 = vmatpush.msra.mxu0 %v131
    %1484 = vmatpush.msra.mxu0 %v130
    %1485 = vmatpush.msra.mxu0 %v129
    %1486 = vmatpush.msra.mxu0 %v128
    %1487 = vmatpush.msra.mxu0 %v127
    %1488 = vmatpush.msra.mxu0 %v126
    %1489 = vmatmul.f32.gmra.mxu0 %v1389
    %v1490 = vpop.f32.mrf.mxu0
    %v1491 = vadd.f32 %v1471, %v1490
    %1492 = vdwg.mxu0
    %1493 = vmatpush.msra.mxu0 %v157
    %1494 = vmatpush.msra.mxu0 %v156
    %1495 = vmatpush.msra.mxu0 %v155
    %1496 = vmatpush.msra.mxu0 %v154
    %1497 = vmatpush.msra.mxu0 %v153
    %1498 = vmatpush.msra.mxu0 %v152
    %1499 = vmatpush.msra.mxu0 %v151
    %1500 = vmatpush.msra.mxu0 %v150
    %1501 = vmatpush.msra.mxu0 %v149
    %1502 = vmatpush.msra.mxu0 %v148
    %1503 = vmatpush.msra.mxu0 %v147
    %1504 = vmatpush.msra.mxu0 %v146
    %1505 = vmatpush.msra.mxu0 %v145
    %1506 = vmatpush.msra.mxu0 %v144
    %1507 = vmatpush.msra.mxu0 %v143
    %1508 = vmatpush.msra.mxu0 %v142
    %1509 = vmatmul.f32.gmra.mxu0 %v1390
    %v1510 = vpop.f32.mrf.mxu0
    %v1511 = vadd.f32 %v1491, %v1510
    %1512 = vdwg.mxu0
    %1513 = vmatpush.msra.mxu0 %v173
    %1514 = vmatpush.msra.mxu0 %v172
    %1515 = vmatpush.msra.mxu0 %v171
    %1516 = vmatpush.msra.mxu0 %v170
    %1517 = vmatpush.msra.mxu0 %v169
    %1518 = vmatpush.msra.mxu0 %v168
    %1519 = vmatpush.msra.mxu0 %v167
    %1520 = vmatpush.msra.mxu0 %v166
    %1521 = vmatpush.msra.mxu0 %v165
    %1522 = vmatpush.msra.mxu0 %v164
    %1523 = vmatpush.msra.mxu0 %v163
    %1524 = vmatpush.msra.mxu0 %v162
    %1525 = vmatpush.msra.mxu0 %v161
    %1526 = vmatpush.msra.mxu0 %v160
    %1527 = vmatpush.msra.mxu0 %v159
    %1528 = vmatpush.msra.mxu0 %v158
    %1529 = vmatmul.f32.gmra.mxu0 %v1391
    %v1530 = vpop.f32.mrf.mxu0
    %v1531 = vadd.f32 %v1511, %v1530
    %1532 = vdwg.mxu0
    %1533 = vmatpush.msra.mxu0 %v189
    %1534 = vmatpush.msra.mxu0 %v188
    %1535 = vmatpush.msra.mxu0 %v187
    %1536 = vmatpush.msra.mxu0 %v186
    %1537 = vmatpush.msra.mxu0 %v185
    %1538 = vmatpush.msra.mxu0 %v184
    %1539 = vmatpush.msra.mxu0 %v183
    %1540 = vmatpush.msra.mxu0 %v182
    %1541 = vmatpush.msra.mxu0 %v181
    %1542 = vmatpush.msra.mxu0 %v180
    %1543 = vmatpush.msra.mxu0 %v179
    %1544 = vmatpush.msra.mxu0 %v178
    %1545 = vmatpush.msra.mxu0 %v177
    %1546 = vmatpush.msra.mxu0 %v176
    %1547 = vmatpush.msra.mxu0 %v175
    %1548 = vmatpush.msra.mxu0 %v174
    %1549 = vmatmul.f32.gmra.mxu0 %v1392
    %v1550 = vpop.f32.mrf.mxu0
    %v1551 = vadd.f32 %v1531, %v1550
    %1552 = vdwg.mxu0
    %1553 = vmax.xlane.f32.xlu0 %v1551
    %v1554 = vpop.xlane.xlu0 %1553
    %v1555 = vsub.f32 %v1551, %v1554
    %v1556 = vmul.f32 %v1555, 1.442695
    %v1557 = vpow.pop %v1556
    %1558 = vadd.xlane.f32.xlu0 %v1557
    %v1559 = vpop.xlane.xlu0 %1558
    %v1560 = vrcp.pop %v1559
    %v1561 = vmul.f32 %v1557, %v1560
    %v1562 = vsub.f32 %v1561, %v190
    %1563 = vmatpush.xpose.msra.mxu0 %v77
    %1564 = vmatpush.xpose.msra.mxu0 %v76
    %1565 = vmatpush.xpose.msra.mxu0 %v75
    %1566 = vmatpush.xpose.msra.mxu0 %v74
    %1567 = vmatpush.xpose.msra.mxu0 %v73
    %1568 = vmatpush.xpose.msra.mxu0 %v72
    %1569 = vmatpush.xpose.msra.mxu0 %v71
    %1570 = vmatpush.xpose.msra.mxu0 %v70
    %1571 = vmatpush.xpose.msra.mxu0 %v69
    %1572 = vmatpush.xpose.msra.mxu0 %v68
    %1573 = vmatpush.xpose.msra.mxu0 %v67
    %1574 = vmatpush.xpose.msra.mxu0 %v66
    %1575 = vmatpush.xpose.msra.mxu0 %v65
    %1576 = vmatpush.xpose.msra.mxu0 %v64
    %1577 = vmatpush.xpose.msra.mxu0 %v63
    %1578 = vmatpush.xpose.msra.mxu0 %v62
    %1579 = vmatmul.f32.gmra.mxu0 %v1562
    %v1580 = vpop.f32.mrf.mxu0
    %v1581 = vadd.f32 0.0, %v1580
    %1582 = vdwg.mxu0
    %1583 = vmatpush.xpose.msra.mxu0 %v93
    %1584 = vmatpush.xpose.msra.mxu0 %v92
    %1585 = vmatpush.xpose.msra.mxu0 %v91
    %1586 = vmatpush.xpose.msra.mxu0 %v90
    %1587 = vmatpush.xpose.msra.mxu0 %v89
    %1588 = vmatpush.xpose.msra.mxu0 %v88
    %1589 = vmatpush.xpose.msra.mxu0 %v87
    %1590 = vmatpush.xpose.msra.mxu0 %v86
    %1591 = vmatpush.xpose.msra.mxu0 %v85
    %1592 = vmatpush.xpose.msra.mxu0 %v84
    %1593 = vmatpush.xpose.msra.mxu0 %v83
    %1594 = vmatpush.xpose.msra.mxu0 %v82
    %1595 = vmatpush.xpose.msra.mxu0 %v81
    %1596 = vmatpush.xpose.msra.mxu0 %v80
    %1597 = vmatpush.xpose.msra.mxu0 %v79
    %1598 = vmatpush.xpose.msra.mxu0 %v78
    %1599 = vmatmul.f32.gmra.mxu0 %v1562
    %v1600 = vpop.f32.mrf.mxu0
    %v1601 = vadd.f32 0.0, %v1600
    %1602 = vdwg.mxu0
    %1603 = vmatpush.xpose.msra.mxu0 %v109
    %1604 = vmatpush.xpose.msra.mxu0 %v108
    %1605 = vmatpush.xpose.msra.mxu0 %v107
    %1606 = vmatpush.xpose.msra.mxu0 %v106
    %1607 = vmatpush.xpose.msra.mxu0 %v105
    %1608 = vmatpush.xpose.msra.mxu0 %v104
    %1609 = vmatpush.xpose.msra.mxu0 %v103
    %1610 = vmatpush.xpose.msra.mxu0 %v102
    %1611 = vmatpush.xpose.msra.mxu0 %v101
    %1612 = vmatpush.xpose.msra.mxu0 %v100
    %1613 = vmatpush.xpose.msra.mxu0 %v99
    %1614 = vmatpush.xpose.msra.mxu0 %v98
    %1615 = vmatpush.xpose.msra.mxu0 %v97
    %1616 = vmatpush.xpose.msra.mxu0 %v96
    %1617 = vmatpush.xpose.msra.mxu0 %v95
    %1618 = vmatpush.xpose.msra.mxu0 %v94
    %1619 = vmatmul.f32.gmra.mxu0 %v1562
    %v1620 = vpop.f32.mrf.mxu0
    %v1621 = vadd.f32 0.0, %v1620
    %1622 = vdwg.mxu0
    %1623 = vmatpush.xpose.msra.mxu0 %v125
    %1624 = vmatpush.xpose.msra.mxu0 %v124
    %1625 = vmatpush.xpose.msra.mxu0 %v123
    %1626 = vmatpush.xpose.msra.mxu0 %v122
    %1627 = vmatpush.xpose.msra.mxu0 %v121
    %1628 = vmatpush.xpose.msra.mxu0 %v120
    %1629 = vmatpush.xpose.msra.mxu0 %v119
    %1630 = vmatpush.xpose.msra.mxu0 %v118
    %1631 = vmatpush.xpose.msra.mxu0 %v117
    %1632 = vmatpush.xpose.msra.mxu0 %v116
    %1633 = vmatpush.xpose.msra.mxu0 %v115
    %1634 = vmatpush.xpose.msra.mxu0 %v114
    %1635 = vmatpush.xpose.msra.mxu0 %v113
    %1636 = vmatpush.xpose.msra.mxu0 %v112
    %1637 = vmatpush.xpose.msra.mxu0 %v111
    %1638 = vmatpush.xpose.msra.mxu0 %v110
    %1639 = vmatmul.f32.gmra.mxu0 %v1562
    %v1640 = vpop.f32.mrf.mxu0
    %v1641 = vadd.f32 0.0, %v1640
    %1642 = vdwg.mxu0
    %1643 = vmatpush.xpose.msra.mxu0 %v141
    %1644 = vmatpush.xpose.msra.mxu0 %v140
    %1645 = vmatpush.xpose.msra.mxu0 %v139
    %1646 = vmatpush.xpose.msra.mxu0 %v138
    %1647 = vmatpush.xpose.msra.mxu0 %v137
    %1648 = vmatpush.xpose.msra.mxu0 %v136
    %1649 = vmatpush.xpose.msra.mxu0 %v135
    %1650 = vmatpush.xpose.msra.mxu0 %v134
    %1651 = vmatpush.xpose.msra.mxu0 %v133
    %1652 = vmatpush.xpose.msra.mxu0 %v132
    %1653 = vmatpush.xpose.msra.mxu0 %v131
    %1654 = vmatpush.xpose.msra.mxu0 %v130
    %1655 = vmatpush.xpose.msra.mxu0 %v129
    %1656 = vmatpush.xpose.msra.mxu0 %v128
    %1657 = vmatpush.xpose.msra.mxu0 %v127
    %1658 = vmatpush.xpose.msra.mxu0 %v126
    %1659 = vmatmul.f32.gmra.mxu0 %v1562
    %v1660 = vpop.f32.mrf.mxu0
    %v1661 = vadd.f32 0.0, %v1660
    %1662 = vdwg.mxu0
    %1663 = vmatpush.xpose.msra.mxu0 %v157
    %1664 = vmatpush.xpose.msra.mxu0 %v156
    %1665 = vmatpush.xpose.msra.mxu0 %v155
    %1666 = vmatpush.xpose.msra.mxu0 %v154
    %1667 = vmatpush.xpose.msra.mxu0 %v153
    %1668 = vmatpush.xpose.msra.mxu0 %v152
    %1669 = vmatpush.xpose.msra.mxu0 %v151
    %1670 = vmatpush.xpose.msra.mxu0 %v150
    %1671 = vmatpush.xpose.msra.mxu0 %v149
    %1672 = vmatpush.xpose.msra.mxu0 %v148
    %1673 = vmatpush.xpose.msra.mxu0 %v147
    %1674 = vmatpush.xpose.msra.mxu0 %v146
    %1675 = vmatpush.xpose.msra.mxu0 %v145
    %1676 = vmatpush.xpose.msra.mxu0 %v144
    %1677 = vmatpush.xpose.msra.mxu0 %v143
    %1678 = vmatpush.xpose.msra.mxu0 %v142
    %1679 = vmatmul.f32.gmra.mxu0 %v1562
    %v1680 = vpop.f32.mrf.mxu0
    %v1681 = vadd.f32 0.0, %v1680
    %1682 = vdwg.mxu0
    %1683 = vmatpush.xpose.msra.mxu0 %v173
    %1684 = vmatpush.xpose.msra.mxu0 %v172
    %1685 = vmatpush.xpose.msra.mxu0 %v171
    %1686 = vmatpush.xpose.msra.mxu0 %v170
    %1687 = vmatpush.xpose.msra.mxu0 %v169
    %1688 = vmatpush.xpose.msra.mxu0 %v168
    %1689 = vmatpush.xpose.msra.mxu0 %v167
    %1690 = vmatpush.xpose.msra.mxu0 %v166
    %1691 = vmatpush.xpose.msra.mxu0 %v165
    %1692 = vmatpush.xpose.msra.mxu0 %v164
    %1693 = vmatpush.xpose.msra.mxu0 %v163
    %1694 = vmatpush.xpose.msra.mxu0 %v162
    %1695 = vmatpush.xpose.msra.mxu0 %v161
    %1696 = vmatpush.xpose.msra.mxu0 %v160
    %1697 = vmatpush.xpose.msra.mxu0 %v159
    %1698 = vmatpush.xpose.msra.mxu0 %v158
    %1699 = vmatmul.f32.gmra.mxu0 %v1562
    %v1700 = vpop.f32.mrf.mxu0
    %v1701 = vadd.f32 0.0, %v1700
    %1702 = vdwg.mxu0
    %1703 = vmatpush.xpose.msra.mxu0 %v189
    %1704 = vmatpush.xpose.msra.mxu0 %v188
    %1705 = vmatpush.xpose.msra.mxu0 %v187
    %1706 = vmatpush.xpose.msra.mxu0 %v186
    %1707 = vmatpush.xpose.msra.mxu0 %v185
    %1708 = vmatpush.xpose.msra.mxu0 %v184
    %1709 = vmatpush.xpose.msra.mxu0 %v183
    %1710 = vmatpush.xpose.msra.mxu0 %v182
    %1711 = vmatpush.xpose.msra.mxu0 %v181
    %1712 = vmatpush.xpose.msra.mxu0 %v180
    %1713 = vmatpush.xpose.msra.mxu0 %v179
    %1714 = vmatpush.xpose.msra.mxu0 %v178
    %1715 = vmatpush.xpose.msra.mxu0 %v177
    %1716 = vmatpush.xpose.msra.mxu0 %v176
    %1717 = vmatpush.xpose.msra.mxu0 %v175
    %1718 = vmatpush.xpose.msra.mxu0 %v174
    %1719 = vmatmul.f32.gmra.mxu0 %v1562
    %v1720 = vpop.f32.mrf.mxu0
    %v1721 = vadd.f32 0.0, %v1720
    %1722 = vdwg.mxu0
    %vm1723 = vcmp.gt.f32.partialorder %v1581, 0.0
    %vm1724 = vcmp.gt.f32.partialorder %v1601, 0.0
    %vm1725 = vcmp.gt.f32.partialorder %v1621, 0.0
    %vm1726 = vcmp.gt.f32.partialorder %v1641, 0.0
    %vm1727 = vcmp.gt.f32.partialorder %v1661, 0.0
    %vm1728 = vcmp.gt.f32.partialorder %v1681, 0.0
    %vm1729 = vcmp.gt.f32.partialorder %v1701, 0.0
    %vm1730 = vcmp.gt.f32.partialorder %v1721, 0.0
    %vm1731 = vcmp.lt.f32.partialorder %v1581, 0.0
    %vm1732 = vcmp.lt.f32.partialorder %v1601, 0.0
    %vm1733 = vcmp.lt.f32.partialorder %v1621, 0.0
    %vm1734 = vcmp.lt.f32.partialorder %v1641, 0.0
    %vm1735 = vcmp.lt.f32.partialorder %v1661, 0.0
    %vm1736 = vcmp.lt.f32.partialorder %v1681, 0.0
    %vm1737 = vcmp.lt.f32.partialorder %v1701, 0.0
    %vm1738 = vcmp.lt.f32.partialorder %v1721, 0.0
    %v1739 = vsel %vm1731, -0.007843138, 0.0
    %v1740 = vsel %vm1732, -0.007843138, 0.0
    %v1741 = vsel %vm1733, -0.007843138, 0.0
    %v1742 = vsel %vm1734, -0.007843138, 0.0
    %v1743 = vsel %vm1735, -0.007843138, 0.0
    %v1744 = vsel %vm1736, -0.007843138, 0.0
    %v1745 = vsel %vm1737, -0.007843138, 0.0
    %v1746 = vsel %vm1738, -0.007843138, 0.0
    %v1747 = vsel %vm1723, 0.007843138, %v1739
    %v1748 = vsel %vm1724, 0.007843138, %v1740
    %v1749 = vsel %vm1725, 0.007843138, %v1741
    %v1750 = vsel %vm1726, 0.007843138, %v1742
    %v1751 = vsel %vm1727, 0.007843138, %v1743
    %v1752 = vsel %vm1728, 0.007843138, %v1744
    %v1753 = vsel %vm1729, 0.007843138, %v1745
    %v1754 = vsel %vm1730, 0.007843138, %v1746
    %v1755 = vadd.f32 %v1385, %v1747
    %v1756 = vadd.f32 %v1386, %v1748
    %v1757 = vadd.f32 %v1387, %v1749
    %v1758 = vadd.f32 %v1388, %v1750
    %v1759 = vadd.f32 %v1389, %v1751
    %v1760 = vadd.f32 %v1390, %v1752
    %v1761 = vadd.f32 %v1391, %v1753
    %v1762 = vadd.f32 %v1392, %v1754
    %v1763 = vmax.f32 %v1755, %v203
    %v1764 = vmax.f32 %v1756, %v204
    %v1765 = vmax.f32 %v1757, %v205
    %v1766 = vmax.f32 %v1758, %v206
    %v1767 = vmax.f32 %v1759, %v207
    %v1768 = vmax.f32 %v1760, %v208
    %v1769 = vmax.f32 %v1761, %v209
    %v1770 = vmax.f32 %v1762, %v210
    %v1771 = vmin.f32 %v1763, %v219
    %v1772 = vmin.f32 %v1764, %v220
    %v1773 = vmin.f32 %v1765, %v221
    %v1774 = vmin.f32 %v1766, %v222
    %v1775 = vmin.f32 %v1767, %v223
    %v1776 = vmin.f32 %v1768, %v224
    %v1777 = vmin.f32 %v1769, %v225
    %v1778 = vmin.f32 %v1770, %v226
    %1779 = vmatpush.msra.mxu0 %v77
    %1780 = vmatpush.msra.mxu0 %v76
    %1781 = vmatpush.msra.mxu0 %v75
    %1782 = vmatpush.msra.mxu0 %v74
    %1783 = vmatpush.msra.mxu0 %v73
    %1784 = vmatpush.msra.mxu0 %v72
    %1785 = vmatpush.msra.mxu0 %v71
    %1786 = vmatpush.msra.mxu0 %v70
    %1787 = vmatpush.msra.mxu0 %v69
    %1788 = vmatpush.msra.mxu0 %v68
    %1789 = vmatpush.msra.mxu0 %v67
    %1790 = vmatpush.msra.mxu0 %v66
    %1791 = vmatpush.msra.mxu0 %v65
    %1792 = vmatpush.msra.mxu0 %v64
    %1793 = vmatpush.msra.mxu0 %v63
    %1794 = vmatpush.msra.mxu0 %v62
    %1795 = vmatmul.f32.gmra.mxu0 %v1771
    %v1796 = vpop.f32.mrf.mxu0
    %v1797 = vadd.f32 %v193, %v1796
    %1798 = vdwg.mxu0
    %1799 = vmatpush.msra.mxu0 %v93
    %1800 = vmatpush.msra.mxu0 %v92
    %1801 = vmatpush.msra.mxu0 %v91
    %1802 = vmatpush.msra.mxu0 %v90
    %1803 = vmatpush.msra.mxu0 %v89
    %1804 = vmatpush.msra.mxu0 %v88
    %1805 = vmatpush.msra.mxu0 %v87
    %1806 = vmatpush.msra.mxu0 %v86
    %1807 = vmatpush.msra.mxu0 %v85
    %1808 = vmatpush.msra.mxu0 %v84
    %1809 = vmatpush.msra.mxu0 %v83
    %1810 = vmatpush.msra.mxu0 %v82
    %1811 = vmatpush.msra.mxu0 %v81
    %1812 = vmatpush.msra.mxu0 %v80
    %1813 = vmatpush.msra.mxu0 %v79
    %1814 = vmatpush.msra.mxu0 %v78
    %1815 = vmatmul.f32.gmra.mxu0 %v1772
    %v1816 = vpop.f32.mrf.mxu0
    %v1817 = vadd.f32 %v1797, %v1816
    %1818 = vdwg.mxu0
    %1819 = vmatpush.msra.mxu0 %v109
    %1820 = vmatpush.msra.mxu0 %v108
    %1821 = vmatpush.msra.mxu0 %v107
    %1822 = vmatpush.msra.mxu0 %v106
    %1823 = vmatpush.msra.mxu0 %v105
    %1824 = vmatpush.msra.mxu0 %v104
    %1825 = vmatpush.msra.mxu0 %v103
    %1826 = vmatpush.msra.mxu0 %v102
    %1827 = vmatpush.msra.mxu0 %v101
    %1828 = vmatpush.msra.mxu0 %v100
    %1829 = vmatpush.msra.mxu0 %v99
    %1830 = vmatpush.msra.mxu0 %v98
    %1831 = vmatpush.msra.mxu0 %v97
    %1832 = vmatpush.msra.mxu0 %v96
    %1833 = vmatpush.msra.mxu0 %v95
    %1834 = vmatpush.msra.mxu0 %v94
    %1835 = vmatmul.f32.gmra.mxu0 %v1773
    %v1836 = vpop.f32.mrf.mxu0
    %v1837 = vadd.f32 %v1817, %v1836
    %1838 = vdwg.mxu0
    %1839 = vmatpush.msra.mxu0 %v125
    %1840 = vmatpush.msra.mxu0 %v124
    %1841 = vmatpush.msra.mxu0 %v123
    %1842 = vmatpush.msra.mxu0 %v122
    %1843 = vmatpush.msra.mxu0 %v121
    %1844 = vmatpush.msra.mxu0 %v120
    %1845 = vmatpush.msra.mxu0 %v119
    %1846 = vmatpush.msra.mxu0 %v118
    %1847 = vmatpush.msra.mxu0 %v117
    %1848 = vmatpush.msra.mxu0 %v116
    %1849 = vmatpush.msra.mxu0 %v115
    %1850 = vmatpush.msra.mxu0 %v114
    %1851 = vmatpush.msra.mxu0 %v113
    %1852 = vmatpush.msra.mxu0 %v112
    %1853 = vmatpush.msra.mxu0 %v111
    %1854 = vmatpush.msra.mxu0 %v110
    %1855 = vmatmul.f32.gmra.mxu0 %v1774
    %v1856 = vpop.f32.mrf.mxu0
    %v1857 = vadd.f32 %v1837, %v1856
    %1858 = vdwg.mxu0
    %1859 = vmatpush.msra.mxu0 %v141
    %1860 = vmatpush.msra.mxu0 %v140
    %1861 = vmatpush.msra.mxu0 %v139
    %1862 = vmatpush.msra.mxu0 %v138
    %1863 = vmatpush.msra.mxu0 %v137
    %1864 = vmatpush.msra.mxu0 %v136
    %1865 = vmatpush.msra.mxu0 %v135
    %1866 = vmatpush.msra.mxu0 %v134
    %1867 = vmatpush.msra.mxu0 %v133
    %1868 = vmatpush.msra.mxu0 %v132
    %1869 = vmatpush.msra.mxu0 %v131
    %1870 = vmatpush.msra.mxu0 %v130
    %1871 = vmatpush.msra.mxu0 %v129
    %1872 = vmatpush.msra.mxu0 %v128
    %1873 = vmatpush.msra.mxu0 %v127
    %1874 = vmatpush.msra.mxu0 %v126
    %1875 = vmatmul.f32.gmra.mxu0 %v1775
    %v1876 = vpop.f32.mrf.mxu0
    %v1877 = vadd.f32 %v1857, %v1876
    %1878 = vdwg.mxu0
    %1879 = vmatpush.msra.mxu0 %v157
    %1880 = vmatpush.msra.mxu0 %v156
    %1881 = vmatpush.msra.mxu0 %v155
    %1882 = vmatpush.msra.mxu0 %v154
    %1883 = vmatpush.msra.mxu0 %v153
    %1884 = vmatpush.msra.mxu0 %v152
    %1885 = vmatpush.msra.mxu0 %v151
    %1886 = vmatpush.msra.mxu0 %v150
    %1887 = vmatpush.msra.mxu0 %v149
    %1888 = vmatpush.msra.mxu0 %v148
    %1889 = vmatpush.msra.mxu0 %v147
    %1890 = vmatpush.msra.mxu0 %v146
    %1891 = vmatpush.msra.mxu0 %v145
    %1892 = vmatpush.msra.mxu0 %v144
    %1893 = vmatpush.msra.mxu0 %v143
    %1894 = vmatpush.msra.mxu0 %v142
    %1895 = vmatmul.f32.gmra.mxu0 %v1776
    %v1896 = vpop.f32.mrf.mxu0
    %v1897 = vadd.f32 %v1877, %v1896
    %1898 = vdwg.mxu0
    %1899 = vmatpush.msra.mxu0 %v173
    %1900 = vmatpush.msra.mxu0 %v172
    %1901 = vmatpush.msra.mxu0 %v171
    %1902 = vmatpush.msra.mxu0 %v170
    %1903 = vmatpush.msra.mxu0 %v169
    %1904 = vmatpush.msra.mxu0 %v168
    %1905 = vmatpush.msra.mxu0 %v167
    %1906 = vmatpush.msra.mxu0 %v166
    %1907 = vmatpush.msra.mxu0 %v165
    %1908 = vmatpush.msra.mxu0 %v164
    %1909 = vmatpush.msra.mxu0 %v163
    %1910 = vmatpush.msra.mxu0 %v162
    %1911 = vmatpush.msra.mxu0 %v161
    %1912 = vmatpush.msra.mxu0 %v160
    %1913 = vmatpush.msra.mxu0 %v159
    %1914 = vmatpush.msra.mxu0 %v158
    %1915 = vmatmul.f32.gmra.mxu0 %v1777
    %v1916 = vpop.f32.mrf.mxu0
    %v1917 = vadd.f32 %v1897, %v1916
    %1918 = vdwg.mxu0
    %1919 = vmatpush.msra.mxu0 %v189
    %1920 = vmatpush.msra.mxu0 %v188
    %1921 = vmatpush.msra.mxu0 %v187
    %1922 = vmatpush.msra.mxu0 %v186
    %1923 = vmatpush.msra.mxu0 %v185
    %1924 = vmatpush.msra.mxu0 %v184
    %1925 = vmatpush.msra.mxu0 %v183
    %1926 = vmatpush.msra.mxu0 %v182
    %1927 = vmatpush.msra.mxu0 %v181
    %1928 = vmatpush.msra.mxu0 %v180
    %1929 = vmatpush.msra.mxu0 %v179
    %1930 = vmatpush.msra.mxu0 %v178
    %1931 = vmatpush.msra.mxu0 %v177
    %1932 = vmatpush.msra.mxu0 %v176
    %1933 = vmatpush.msra.mxu0 %v175
    %1934 = vmatpush.msra.mxu0 %v174
    %1935 = vmatmul.f32.gmra.mxu0 %v1778
    %v1936 = vpop.f32.mrf.mxu0
    %v1937 = vadd.f32 %v1917, %v1936
    %1938 = vdwg.mxu0
    %1939 = vmax.xlane.f32.xlu0 %v1937
    %v1940 = vpop.xlane.xlu0 %1939
    %v1941 = vsub.f32 %v1937, %v1940
    %v1942 = vmul.f32 %v1941, 1.442695
    %v1943 = vpow.pop %v1942
    %1944 = vadd.xlane.f32.xlu0 %v1943
    %v1945 = vpop.xlane.xlu0 %1944
    %v1946 = vrcp.pop %v1945
    %v1947 = vmul.f32 %v1943, %v1946
    %v1948 = vsub.f32 %v1947, %v190
    %1949 = vmatpush.xpose.msra.mxu0 %v77
    %1950 = vmatpush.xpose.msra.mxu0 %v76
    %1951 = vmatpush.xpose.msra.mxu0 %v75
    %1952 = vmatpush.xpose.msra.mxu0 %v74
    %1953 = vmatpush.xpose.msra.mxu0 %v73
    %1954 = vmatpush.xpose.msra.mxu0 %v72
    %1955 = vmatpush.xpose.msra.mxu0 %v71
    %1956 = vmatpush.xpose.msra.mxu0 %v70
    %1957 = vmatpush.xpose.msra.mxu0 %v69
    %1958 = vmatpush.xpose.msra.mxu0 %v68
    %1959 = vmatpush.xpose.msra.mxu0 %v67
    %1960 = vmatpush.xpose.msra.mxu0 %v66
    %1961 = vmatpush.xpose.msra.mxu0 %v65
    %1962 = vmatpush.xpose.msra.mxu0 %v64
    %1963 = vmatpush.xpose.msra.mxu0 %v63
    %1964 = vmatpush.xpose.msra.mxu0 %v62
    %1965 = vmatmul.f32.gmra.mxu0 %v1948
    %v1966 = vpop.f32.mrf.mxu0
    %v1967 = vadd.f32 0.0, %v1966
    %1968 = vdwg.mxu0
    %1969 = vmatpush.xpose.msra.mxu0 %v93
    %1970 = vmatpush.xpose.msra.mxu0 %v92
    %1971 = vmatpush.xpose.msra.mxu0 %v91
    %1972 = vmatpush.xpose.msra.mxu0 %v90
    %1973 = vmatpush.xpose.msra.mxu0 %v89
    %1974 = vmatpush.xpose.msra.mxu0 %v88
    %1975 = vmatpush.xpose.msra.mxu0 %v87
    %1976 = vmatpush.xpose.msra.mxu0 %v86
    %1977 = vmatpush.xpose.msra.mxu0 %v85
    %1978 = vmatpush.xpose.msra.mxu0 %v84
    %1979 = vmatpush.xpose.msra.mxu0 %v83
    %1980 = vmatpush.xpose.msra.mxu0 %v82
    %1981 = vmatpush.xpose.msra.mxu0 %v81
    %1982 = vmatpush.xpose.msra.mxu0 %v80
    %1983 = vmatpush.xpose.msra.mxu0 %v79
    %1984 = vmatpush.xpose.msra.mxu0 %v78
    %1985 = vmatmul.f32.gmra.mxu0 %v1948
    %v1986 = vpop.f32.mrf.mxu0
    %v1987 = vadd.f32 0.0, %v1986
    %1988 = vdwg.mxu0
    %1989 = vmatpush.xpose.msra.mxu0 %v109
    %1990 = vmatpush.xpose.msra.mxu0 %v108
    %1991 = vmatpush.xpose.msra.mxu0 %v107
    %1992 = vmatpush.xpose.msra.mxu0 %v106
    %1993 = vmatpush.xpose.msra.mxu0 %v105
    %1994 = vmatpush.xpose.msra.mxu0 %v104
    %1995 = vmatpush.xpose.msra.mxu0 %v103
    %1996 = vmatpush.xpose.msra.mxu0 %v102
    %1997 = vmatpush.xpose.msra.mxu0 %v101
    %1998 = vmatpush.xpose.msra.mxu0 %v100
    %1999 = vmatpush.xpose.msra.mxu0 %v99
    %2000 = vmatpush.xpose.msra.mxu0 %v98
    %2001 = vmatpush.xpose.msra.mxu0 %v97
    %2002 = vmatpush.xpose.msra.mxu0 %v96
    %2003 = vmatpush.xpose.msra.mxu0 %v95
    %2004 = vmatpush.xpose.msra.mxu0 %v94
    %2005 = vmatmul.f32.gmra.mxu0 %v1948
    %v2006 = vpop.f32.mrf.mxu0
    %v2007 = vadd.f32 0.0, %v2006
    %2008 = vdwg.mxu0
    %2009 = vmatpush.xpose.msra.mxu0 %v125
    %2010 = vmatpush.xpose.msra.mxu0 %v124
    %2011 = vmatpush.xpose.msra.mxu0 %v123
    %2012 = vmatpush.xpose.msra.mxu0 %v122
    %2013 = vmatpush.xpose.msra.mxu0 %v121
    %2014 = vmatpush.xpose.msra.mxu0 %v120
    %2015 = vmatpush.xpose.msra.mxu0 %v119
    %2016 = vmatpush.xpose.msra.mxu0 %v118
    %2017 = vmatpush.xpose.msra.mxu0 %v117
    %2018 = vmatpush.xpose.msra.mxu0 %v116
    %2019 = vmatpush.xpose.msra.mxu0 %v115
    %2020 = vmatpush.xpose.msra.mxu0 %v114
    %2021 = vmatpush.xpose.msra.mxu0 %v113
    %2022 = vmatpush.xpose.msra.mxu0 %v112
    %2023 = vmatpush.xpose.msra.mxu0 %v111
    %2024 = vmatpush.xpose.msra.mxu0 %v110
    %2025 = vmatmul.f32.gmra.mxu0 %v1948
    %v2026 = vpop.f32.mrf.mxu0
    %v2027 = vadd.f32 0.0, %v2026
    %2028 = vdwg.mxu0
    %2029 = vmatpush.xpose.msra.mxu0 %v141
    %2030 = vmatpush.xpose.msra.mxu0 %v140
    %2031 = vmatpush.xpose.msra.mxu0 %v139
    %2032 = vmatpush.xpose.msra.mxu0 %v138
    %2033 = vmatpush.xpose.msra.mxu0 %v137
    %2034 = vmatpush.xpose.msra.mxu0 %v136
    %2035 = vmatpush.xpose.msra.mxu0 %v135
    %2036 = vmatpush.xpose.msra.mxu0 %v134
    %2037 = vmatpush.xpose.msra.mxu0 %v133
    %2038 = vmatpush.xpose.msra.mxu0 %v132
    %2039 = vmatpush.xpose.msra.mxu0 %v131
    %2040 = vmatpush.xpose.msra.mxu0 %v130
    %2041 = vmatpush.xpose.msra.mxu0 %v129
    %2042 = vmatpush.xpose.msra.mxu0 %v128
    %2043 = vmatpush.xpose.msra.mxu0 %v127
    %2044 = vmatpush.xpose.msra.mxu0 %v126
    %2045 = vmatmul.f32.gmra.mxu0 %v1948
    %v2046 = vpop.f32.mrf.mxu0
    %v2047 = vadd.f32 0.0, %v2046
    %2048 = vdwg.mxu0
    %2049 = vmatpush.xpose.msra.mxu0 %v157
    %2050 = vmatpush.xpose.msra.mxu0 %v156
    %2051 = vmatpush.xpose.msra.mxu0 %v155
    %2052 = vmatpush.xpose.msra.mxu0 %v154
    %2053 = vmatpush.xpose.msra.mxu0 %v153
    %2054 = vmatpush.xpose.msra.mxu0 %v152
    %2055 = vmatpush.xpose.msra.mxu0 %v151
    %2056 = vmatpush.xpose.msra.mxu0 %v150
    %2057 = vmatpush.xpose.msra.mxu0 %v149
    %2058 = vmatpush.xpose.msra.mxu0 %v148
    %2059 = vmatpush.xpose.msra.mxu0 %v147
    %2060 = vmatpush.xpose.msra.mxu0 %v146
    %2061 = vmatpush.xpose.msra.mxu0 %v145
    %2062 = vmatpush.xpose.msra.mxu0 %v144
    %2063 = vmatpush.xpose.msra.mxu0 %v143
    %2064 = vmatpush.xpose.msra.mxu0 %v142
    %2065 = vmatmul.f32.gmra.mxu0 %v1948
    %v2066 = vpop.f32.mrf.mxu0
    %v2067 = vadd.f32 0.0, %v2066
    %2068 = vdwg.mxu0
    %2069 = vmatpush.xpose.msra.mxu0 %v173
    %2070 = vmatpush.xpose.msra.mxu0 %v172
    %2071 = vmatpush.xpose.msra.mxu0 %v171
    %2072 = vmatpush.xpose.msra.mxu0 %v170
    %2073 = vmatpush.xpose.msra.mxu0 %v169
    %2074 = vmatpush.xpose.msra.mxu0 %v168
    %2075 = vmatpush.xpose.msra.mxu0 %v167
    %2076 = vmatpush.xpose.msra.mxu0 %v166
    %2077 = vmatpush.xpose.msra.mxu0 %v165
    %2078 = vmatpush.xpose.msra.mxu0 %v164
    %2079 = vmatpush.xpose.msra.mxu0 %v163
    %2080 = vmatpush.xpose.msra.mxu0 %v162
    %2081 = vmatpush.xpose.msra.mxu0 %v161
    %2082 = vmatpush.xpose.msra.mxu0 %v160
    %2083 = vmatpush.xpose.msra.mxu0 %v159
    %2084 = vmatpush.xpose.msra.mxu0 %v158
    %2085 = vmatmul.f32.gmra.mxu0 %v1948
    %v2086 = vpop.f32.mrf.mxu0
    %v2087 = vadd.f32 0.0, %v2086
    %2088 = vdwg.mxu0
    %2089 = vmatpush.xpose.msra.mxu0 %v189
    %2090 = vmatpush.xpose.msra.mxu0 %v188
    %2091 = vmatpush.xpose.msra.mxu0 %v187
    %2092 = vmatpush.xpose.msra.mxu0 %v186
    %2093 = vmatpush.xpose.msra.mxu0 %v185
    %2094 = vmatpush.xpose.msra.mxu0 %v184
    %2095 = vmatpush.xpose.msra.mxu0 %v183
    %2096 = vmatpush.xpose.msra.mxu0 %v182
    %2097 = vmatpush.xpose.msra.mxu0 %v181
    %2098 = vmatpush.xpose.msra.mxu0 %v180
    %2099 = vmatpush.xpose.msra.mxu0 %v179
    %2100 = vmatpush.xpose.msra.mxu0 %v178
    %2101 = vmatpush.xpose.msra.mxu0 %v177
    %2102 = vmatpush.xpose.msra.mxu0 %v176
    %2103 = vmatpush.xpose.msra.mxu0 %v175
    %2104 = vmatpush.xpose.msra.mxu0 %v174
    %2105 = vmatmul.f32.gmra.mxu0 %v1948
    %v2106 = vpop.f32.mrf.mxu0
    %v2107 = vadd.f32 0.0, %v2106
    %2108 = vdwg.mxu0
    %vm2109 = vcmp.gt.f32.partialorder %v1967, 0.0
    %vm2110 = vcmp.gt.f32.partialorder %v1987, 0.0
    %vm2111 = vcmp.gt.f32.partialorder %v2007, 0.0
    %vm2112 = vcmp.gt.f32.partialorder %v2027, 0.0
    %vm2113 = vcmp.gt.f32.partialorder %v2047, 0.0
    %vm2114 = vcmp.gt.f32.partialorder %v2067, 0.0
    %vm2115 = vcmp.gt.f32.partialorder %v2087, 0.0
    %vm2116 = vcmp.gt.f32.partialorder %v2107, 0.0
    %vm2117 = vcmp.lt.f32.partialorder %v1967, 0.0
    %vm2118 = vcmp.lt.f32.partialorder %v1987, 0.0
    %vm2119 = vcmp.lt.f32.partialorder %v2007, 0.0
    %vm2120 = vcmp.lt.f32.partialorder %v2027, 0.0
    %vm2121 = vcmp.lt.f32.partialorder %v2047, 0.0
    %vm2122 = vcmp.lt.f32.partialorder %v2067, 0.0
    %vm2123 = vcmp.lt.f32.partialorder %v2087, 0.0
    %vm2124 = vcmp.lt.f32.partialorder %v2107, 0.0
    %v2125 = vsel %vm2117, -0.007843138, 0.0
    %v2126 = vsel %vm2118, -0.007843138, 0.0
    %v2127 = vsel %vm2119, -0.007843138, 0.0
    %v2128 = vsel %vm2120, -0.007843138, 0.0
    %v2129 = vsel %vm2121, -0.007843138, 0.0
    %v2130 = vsel %vm2122, -0.007843138, 0.0
    %v2131 = vsel %vm2123, -0.007843138, 0.0
    %v2132 = vsel %vm2124, -0.007843138, 0.0
    %v2133 = vsel %vm2109, 0.007843138, %v2125
    %v2134 = vsel %vm2110, 0.007843138, %v2126
    %v2135 = vsel %vm2111, 0.007843138, %v2127
    %v2136 = vsel %vm2112, 0.007843138, %v2128
    %v2137 = vsel %vm2113, 0.007843138, %v2129
    %v2138 = vsel %vm2114, 0.007843138, %v2130
    %v2139 = vsel %vm2115, 0.007843138, %v2131
    %v2140 = vsel %vm2116, 0.007843138, %v2132
    %v2141 = vadd.f32 %v1771, %v2133
    %v2142 = vadd.f32 %v1772, %v2134
    %v2143 = vadd.f32 %v1773, %v2135
    %v2144 = vadd.f32 %v1774, %v2136
    %v2145 = vadd.f32 %v1775, %v2137
    %v2146 = vadd.f32 %v1776, %v2138
    %v2147 = vadd.f32 %v1777, %v2139
    %v2148 = vadd.f32 %v1778, %v2140
    %v2149 = vmax.f32 %v2141, %v203
    %v2150 = vmax.f32 %v2142, %v204
    %v2151 = vmax.f32 %v2143, %v205
    %v2152 = vmax.f32 %v2144, %v206
    %v2153 = vmax.f32 %v2145, %v207
    %v2154 = vmax.f32 %v2146, %v208
    %v2155 = vmax.f32 %v2147, %v209
    %v2156 = vmax.f32 %v2148, %v210
    %v2157 = vmin.f32 %v2149, %v219
    %v2158 = vmin.f32 %v2150, %v220
    %v2159 = vmin.f32 %v2151, %v221
    %v2160 = vmin.f32 %v2152, %v222
    %v2161 = vmin.f32 %v2153, %v223
    %v2162 = vmin.f32 %v2154, %v224
    %v2163 = vmin.f32 %v2155, %v225
    %v2164 = vmin.f32 %v2156, %v226
    %2165 = vst [vmem:[#allocation8] sm:$0xff] %v2157
    %2166 = vst [vmem:[#allocation8 + $0x8] sm:$0xff] %v2158
    %2167 = vst [vmem:[#allocation8 + $0x10] sm:$0xff] %v2159
    %2168 = vst [vmem:[#allocation8 + $0x18] sm:$0xff] %v2160
    %2169 = vst [vmem:[#allocation8 + $0x20] sm:$0xff] %v2161
    %2170 = vst [vmem:[#allocation8 + $0x28] sm:$0xff] %v2162
    %2171 = vst [vmem:[#allocation8 + $0x30] sm:$0xff] %v2163
    %2172 = vst [vmem:[#allocation8 + $0x38] sm:$0xff] %v2164
    %2173 = vmatpush.msra.mxu0 %v77
    %2174 = vmatpush.msra.mxu0 %v76
    %2175 = vmatpush.msra.mxu0 %v75
    %2176 = vmatpush.msra.mxu0 %v74
    %2177 = vmatpush.msra.mxu0 %v73
    %2178 = vmatpush.msra.mxu0 %v72
    %2179 = vmatpush.msra.mxu0 %v71
    %2180 = vmatpush.msra.mxu0 %v70
    %2181 = vmatpush.msra.mxu0 %v69
    %2182 = vmatpush.msra.mxu0 %v68
    %2183 = vmatpush.msra.mxu0 %v67
    %2184 = vmatpush.msra.mxu0 %v66
    %2185 = vmatpush.msra.mxu0 %v65
    %2186 = vmatpush.msra.mxu0 %v64
    %2187 = vmatpush.msra.mxu0 %v63
    %2188 = vmatpush.msra.mxu0 %v62
    %2189 = vmatmul.f32.gmra.mxu0 %v2157
    %v2190 = vpop.f32.mrf.mxu0
    %v2191 = vadd.f32 %v193, %v2190
    %2192 = vdwg.mxu0
    %2193 = vmatpush.msra.mxu0 %v93
    %2194 = vmatpush.msra.mxu0 %v92
    %2195 = vmatpush.msra.mxu0 %v91
    %2196 = vmatpush.msra.mxu0 %v90
    %2197 = vmatpush.msra.mxu0 %v89
    %2198 = vmatpush.msra.mxu0 %v88
    %2199 = vmatpush.msra.mxu0 %v87
    %2200 = vmatpush.msra.mxu0 %v86
    %2201 = vmatpush.msra.mxu0 %v85
    %2202 = vmatpush.msra.mxu0 %v84
    %2203 = vmatpush.msra.mxu0 %v83
    %2204 = vmatpush.msra.mxu0 %v82
    %2205 = vmatpush.msra.mxu0 %v81
    %2206 = vmatpush.msra.mxu0 %v80
    %2207 = vmatpush.msra.mxu0 %v79
    %2208 = vmatpush.msra.mxu0 %v78
    %2209 = vmatmul.f32.gmra.mxu0 %v2158
    %v2210 = vpop.f32.mrf.mxu0
    %v2211 = vadd.f32 %v2191, %v2210
    %2212 = vdwg.mxu0
    %2213 = vmatpush.msra.mxu0 %v109
    %2214 = vmatpush.msra.mxu0 %v108
    %2215 = vmatpush.msra.mxu0 %v107
    %2216 = vmatpush.msra.mxu0 %v106
    %2217 = vmatpush.msra.mxu0 %v105
    %2218 = vmatpush.msra.mxu0 %v104
    %2219 = vmatpush.msra.mxu0 %v103
    %2220 = vmatpush.msra.mxu0 %v102
    %2221 = vmatpush.msra.mxu0 %v101
    %2222 = vmatpush.msra.mxu0 %v100
    %2223 = vmatpush.msra.mxu0 %v99
    %2224 = vmatpush.msra.mxu0 %v98
    %2225 = vmatpush.msra.mxu0 %v97
    %2226 = vmatpush.msra.mxu0 %v96
    %2227 = vmatpush.msra.mxu0 %v95
    %2228 = vmatpush.msra.mxu0 %v94
    %2229 = vmatmul.f32.gmra.mxu0 %v2159
    %v2230 = vpop.f32.mrf.mxu0
    %v2231 = vadd.f32 %v2211, %v2230
    %2232 = vdwg.mxu0
    %2233 = vmatpush.msra.mxu0 %v125
    %2234 = vmatpush.msra.mxu0 %v124
    %2235 = vmatpush.msra.mxu0 %v123
    %2236 = vmatpush.msra.mxu0 %v122
    %2237 = vmatpush.msra.mxu0 %v121
    %2238 = vmatpush.msra.mxu0 %v120
    %2239 = vmatpush.msra.mxu0 %v119
    %2240 = vmatpush.msra.mxu0 %v118
    %2241 = vmatpush.msra.mxu0 %v117
    %2242 = vmatpush.msra.mxu0 %v116
    %2243 = vmatpush.msra.mxu0 %v115
    %2244 = vmatpush.msra.mxu0 %v114
    %2245 = vmatpush.msra.mxu0 %v113
    %2246 = vmatpush.msra.mxu0 %v112
    %2247 = vmatpush.msra.mxu0 %v111
    %2248 = vmatpush.msra.mxu0 %v110
    %2249 = vmatmul.f32.gmra.mxu0 %v2160
    %v2250 = vpop.f32.mrf.mxu0
    %v2251 = vadd.f32 %v2231, %v2250
    %2252 = vdwg.mxu0
    %2253 = vmatpush.msra.mxu0 %v141
    %2254 = vmatpush.msra.mxu0 %v140
    %2255 = vmatpush.msra.mxu0 %v139
    %2256 = vmatpush.msra.mxu0 %v138
    %2257 = vmatpush.msra.mxu0 %v137
    %2258 = vmatpush.msra.mxu0 %v136
    %2259 = vmatpush.msra.mxu0 %v135
    %2260 = vmatpush.msra.mxu0 %v134
    %2261 = vmatpush.msra.mxu0 %v133
    %2262 = vmatpush.msra.mxu0 %v132
    %2263 = vmatpush.msra.mxu0 %v131
    %2264 = vmatpush.msra.mxu0 %v130
    %2265 = vmatpush.msra.mxu0 %v129
    %2266 = vmatpush.msra.mxu0 %v128
    %2267 = vmatpush.msra.mxu0 %v127
    %2268 = vmatpush.msra.mxu0 %v126
    %2269 = vmatmul.f32.gmra.mxu0 %v2161
    %v2270 = vpop.f32.mrf.mxu0
    %v2271 = vadd.f32 %v2251, %v2270
    %2272 = vdwg.mxu0
    %2273 = vmatpush.msra.mxu0 %v157
    %2274 = vmatpush.msra.mxu0 %v156
    %2275 = vmatpush.msra.mxu0 %v155
    %2276 = vmatpush.msra.mxu0 %v154
    %2277 = vmatpush.msra.mxu0 %v153
    %2278 = vmatpush.msra.mxu0 %v152
    %2279 = vmatpush.msra.mxu0 %v151
    %2280 = vmatpush.msra.mxu0 %v150
    %2281 = vmatpush.msra.mxu0 %v149
    %2282 = vmatpush.msra.mxu0 %v148
    %2283 = vmatpush.msra.mxu0 %v147
    %2284 = vmatpush.msra.mxu0 %v146
    %2285 = vmatpush.msra.mxu0 %v145
    %2286 = vmatpush.msra.mxu0 %v144
    %2287 = vmatpush.msra.mxu0 %v143
    %2288 = vmatpush.msra.mxu0 %v142
    %2289 = vmatmul.f32.gmra.mxu0 %v2162
    %v2290 = vpop.f32.mrf.mxu0
    %v2291 = vadd.f32 %v2271, %v2290
    %2292 = vdwg.mxu0
    %2293 = vmatpush.msra.mxu0 %v173
    %2294 = vmatpush.msra.mxu0 %v172
    %2295 = vmatpush.msra.mxu0 %v171
    %2296 = vmatpush.msra.mxu0 %v170
    %2297 = vmatpush.msra.mxu0 %v169
    %2298 = vmatpush.msra.mxu0 %v168
    %2299 = vmatpush.msra.mxu0 %v167
    %2300 = vmatpush.msra.mxu0 %v166
    %2301 = vmatpush.msra.mxu0 %v165
    %2302 = vmatpush.msra.mxu0 %v164
    %2303 = vmatpush.msra.mxu0 %v163
    %2304 = vmatpush.msra.mxu0 %v162
    %2305 = vmatpush.msra.mxu0 %v161
    %2306 = vmatpush.msra.mxu0 %v160
    %2307 = vmatpush.msra.mxu0 %v159
    %2308 = vmatpush.msra.mxu0 %v158
    %2309 = vmatmul.f32.gmra.mxu0 %v2163
    %v2310 = vpop.f32.mrf.mxu0
    %v2311 = vadd.f32 %v2291, %v2310
    %2312 = vdwg.mxu0
    %2313 = vmatpush.msra.mxu0 %v189
    %2314 = vmatpush.msra.mxu0 %v188
    %2315 = vmatpush.msra.mxu0 %v187
    %2316 = vmatpush.msra.mxu0 %v186
    %2317 = vmatpush.msra.mxu0 %v185
    %2318 = vmatpush.msra.mxu0 %v184
    %2319 = vmatpush.msra.mxu0 %v183
    %2320 = vmatpush.msra.mxu0 %v182
    %2321 = vmatpush.msra.mxu0 %v181
    %2322 = vmatpush.msra.mxu0 %v180
    %2323 = vmatpush.msra.mxu0 %v179
    %2324 = vmatpush.msra.mxu0 %v178
    %2325 = vmatpush.msra.mxu0 %v177
    %2326 = vmatpush.msra.mxu0 %v176
    %2327 = vmatpush.msra.mxu0 %v175
    %2328 = vmatpush.msra.mxu0 %v174
    %2329 = vmatmul.f32.gmra.mxu0 %v2164
    %v2330 = vpop.f32.mrf.mxu0
    %v2331 = vadd.f32 %v2311, %v2330
    %2332 = vdwg.mxu0
    %2333 = vst [vmem:[#allocation7] sm:$0xff] %v2331
    // Predicated region
    $region30: #{tpu_custom_call.1} parent=1 // pred_check
      _
    $region31: #{tpu_custom_call.1} parent=1 // pred_check_branch
      %2335 = sbr.rel (0) target = $region33
    $region32: #{tpu_custom_call.1} parent=1 // pred_region
      %2337 = vsyncadd [#allocation4], 0
      %s2339 = sshll.u32 [#allocation7], 4
      %s2340 = int_to_ptr.vmem [resolvable:$true] %s2339
      %s2341 = sshll.u32 %s5, 4
      %s2342 = int_to_ptr.hbm [resolvable:$true] %s2341
      %2344 = dma.vmem_to_hbm [thread:$0]  %s2340, 128, %s2342, [#allocation4]
    $region33: #{tpu_custom_call.1} parent=1 // pred_fallthru
      _
    // Predicated region
    $region34: #{tpu_custom_call.1} parent=1 // pred_check
      _
    $region35: #{tpu_custom_call.1} parent=1 // pred_check_branch
      %2346 = sbr.rel (0) target = $region37
    $region36: #{tpu_custom_call.1} parent=1 // pred_region
      %2348 = vsyncadd [#allocation9], 0
      %s2350 = sshll.u32 [#allocation8], 4
      %s2351 = int_to_ptr.vmem [resolvable:$true] %s2350
      %s2352 = sshll.u32 %s6, 4
      %s2353 = int_to_ptr.hbm [resolvable:$true] %s2352
      %2355 = dma.vmem_to_hbm [thread:$0]  %s2351, 1024, %s2353, [#allocation9]
    $region37: #{tpu_custom_call.1} parent=1 // pred_fallthru
      _
    // Predicated region
    $region38: #{tpu_custom_call.1} parent=1 // pred_check
      _
    $region39: #{tpu_custom_call.1} parent=1 // pred_check_branch
      %2357 = sbr.rel (0) target = $region41
    $region40: #{tpu_custom_call.1} parent=1 // pred_region
      %2359 = dma.done [#allocation4], 128
    $region41: #{tpu_custom_call.1} parent=1 // pred_fallthru
      _
    // Predicated region
    $region42: #{tpu_custom_call.1} parent=1 // pred_check
      _
    $region43: #{tpu_custom_call.1} parent=1 // pred_check_branch
      %2361 = sbr.rel (0) target = $region45
    $region44: #{tpu_custom_call.1} parent=1 // pred_region
      %2363 = dma.done [#allocation9], 1024
    $region45: #{tpu_custom_call.1} parent=1 // pred_fallthru
      _
    %2364 = vsyncpa [#allocation3], 1
    %2365 = vsyncpa [#allocation6], 1
    %2366 = vsyncpa [#allocation4], 1
    %2367 = vsyncpa [#allocation9], 1

</llo_original>
